<compile_context>
chip_gen: v5e
topology: v5e:2x2
jax: 0.10.0
libtpu: 0.0.40
codegen_flags: <defaults>
</compile_context>

<pallas_src>
import functools

import jax
import jax.numpy as jnp
from jax.experimental import pallas as pl
from jax.experimental.pallas import tpu as pltpu

BN_EPS = 1e-5
LANE = 128
SUBLANE = 8


# ----------------------------------------------------------------------------
# Helpers
# ----------------------------------------------------------------------------
def _round_up(x, m):
    return (x + m - 1) // m * m


def _choose_tile(n):
    for t in (512, 256, 128):
        if n >= t:
            return t
    return 128


def _pad2(a, rows, cols):
    return jnp.pad(a, ((0, rows - a.shape[0]), (0, cols - a.shape[1])))


# ----------------------------------------------------------------------------
# Fused kernel: all GINConv layers + global_add_pool + final MLP
#   grid = (num_layers, N/tm, N/tk)   (reduction axis k last)
# ----------------------------------------------------------------------------
def _make_fused_kernel(tm, tk, n_slots):
    def kernel(a_ref, x_ref, p_ref, w1_ref, b1_ref, w2_ref, b2_ref,
               mw1_ref, mb1_ref, mw2_ref, mb2_ref, out_ref,
               h_buf, z_acc, pooled):
        l = pl.program_id(0)
        i = pl.program_id(1)
        k = pl.program_id(2)
        nl = pl.num_programs(0)
        ni = pl.num_programs(1)
        nk = pl.num_programs(2)

        ii = pl.multiple_of(i * tm, tm)
        kk = pl.multiple_of(k * tk, tk)

        # Very first grid step: zero the pooling accumulator.
        @pl.when((l == 0) & (i == 0) & (k == 0))
        def _():
            pooled[...] = jnp.zeros_like(pooled)

        # New output row tile -> reset the aggregation accumulator.
        @pl.when(k == 0)
        def _():
            z_acc[...] = jnp.zeros_like(z_acc)

        # Neighbor aggregation (+ self loop): z_i += A_hat[i, k] @ h_prev[k].
        # Layer 0 reads the pipelined input-feature tile; later layers read
        # the previous layer's output from the VMEM ping-pong buffer (node
        # features never round-trip HBM).
        @pl.when(l == 0)
        def _():
            z_acc[...] += jnp.dot(a_ref[...], x_ref[...],
                                  preferred_element_type=jnp.float32)

        @pl.when(l > 0)
        def _():
            h_prev = h_buf[(l + 1) % n_slots, pl.ds(kk, tk), :]
            z_acc[...] += jnp.dot(a_ref[...], h_prev,
                                  preferred_element_type=jnp.float32)

        # Reduction over k finished: run this layer's MLP on the row tile.
        @pl.when(k == nk - 1)
        def _():
            z = z_acc[...].astype(jnp.bfloat16)
            # Linear (with folded inference BatchNorm) -> ReLU
            h = jnp.dot(z, w1_ref[...], preferred_element_type=jnp.float32)
            h = jnp.maximum(h + b1_ref[...], 0.0)
            # Linear (plain_last) then Net.forward's .relu()
            h = jnp.dot(h.astype(jnp.bfloat16), w2_ref[...],
                        preferred_element_type=jnp.float32)
            h = jnp.maximum(h + b2_ref[...], 0.0)
            h_buf[l % n_slots, pl.ds(ii, tm), :] = h.astype(jnp.bfloat16)

        # Last layer: accumulate global_add_pool for this row tile.
        @pl.when((l == nl - 1) & (k == nk - 1))
        def _():
            h_tile = h_buf[l % n_slots, pl.ds(ii, tm), :]
            pooled[...] += jnp.dot(p_ref[...], h_tile,
                                   preferred_element_type=jnp.float32)

        # Very last grid step: final MLP (Linear -> ReLU -> Dropout[eval] -> Linear).
        @pl.when((l == nl - 1) & (i == ni - 1) & (k == nk - 1))
        def _():
            hp = jnp.dot(pooled[...].astype(jnp.bfloat16), mw1_ref[...],
                         preferred_element_type=jnp.float32)
            hp = jnp.maximum(hp + mb1_ref[...], 0.0)
            out_ref[...] = jnp.dot(hp.astype(jnp.bfloat16), mw2_ref[...],
                                   preferred_element_type=jnp.float32) + mb2_ref[...]

    return kernel


# ----------------------------------------------------------------------------
# Parameter construction (deterministic, synthetic; mirrors the PyTorch init)
# ----------------------------------------------------------------------------
def _linear(key, fan_in, fan_out):
    kw, kb = jax.random.split(key)
    bound = 1.0 / jnp.sqrt(jnp.float32(fan_in))
    w = jax.random.uniform(kw, (fan_in, fan_out), jnp.float32, -bound, bound)
    b = jax.random.uniform(kb, (1, fan_out), jnp.float32, -bound, bound)
    return w, b


def make_params(key, in_channels, hidden_channels, out_channels, num_layers):
    conv_params = []
    c_in = in_channels
    for _ in range(num_layers):
        key, k1, k2 = jax.random.split(key, 3)
        w1, b1 = _linear(k1, c_in, hidden_channels)
        w2, b2 = _linear(k2, hidden_channels, hidden_channels)
        conv_params.append(dict(
            w1=w1, b1=b1, w2=w2, b2=b2,
            gamma=jnp.ones((1, hidden_channels), jnp.float32),
            beta=jnp.zeros((1, hidden_channels), jnp.float32),
            mean=jnp.zeros((1, hidden_channels), jnp.float32),
            var=jnp.ones((1, hidden_channels), jnp.float32),
        ))
        c_in = hidden_channels
    key, k1, k2 = jax.random.split(key, 3)
    w1, b1 = _linear(k1, hidden_channels, hidden_channels)
    w2, b2 = _linear(k2, hidden_channels, out_channels)
    mlp_params = dict(w1=w1, b1=b1, w2=w2, b2=b2)
    return conv_params, mlp_params


# ----------------------------------------------------------------------------
# Full forward: preprocessing (scatter-add adjacency, BN folding, padding)
# in plain JAX; the entire hot path runs inside one fused Pallas kernel.
# ----------------------------------------------------------------------------
@functools.partial(jax.jit, static_argnames=("num_graphs",))
def net_forward(x, edge_index, batch, conv_params, mlp_params, *, num_graphs):
    n, in_c = x.shape
    hidden = conv_params[0]["w2"].shape[1]
    out_c = mlp_params["w2"].shape[1]
    num_layers = len(conv_params)

    d = _round_up(max(in_c, hidden), LANE)    # shared padded channel width
    op = _round_up(out_c, LANE)               # padded output width
    tm = tk = _choose_tile(n)
    np_ = _round_up(n, tm)                    # padded node count
    gp = _round_up(num_graphs, SUBLANE)       # padded graph count
    n_slots = 2 if num_layers > 1 else 1      # ping-pong slots needed

    # ---- dense A_hat = A^T + I (GINConv eps=0, messages flow src->dst) -----
    src, dst = edge_index[0], edge_index[1]
    a_hat = jnp.zeros((np_, np_), jnp.float32).at[dst, src].add(1.0)
    a_hat = a_hat + jnp.eye(np_, dtype=jnp.float32)
    # bf16 is exact for integer degrees <= 256; keep f32 for higher-degree graphs.
    a_hat = a_hat.astype(jnp.bfloat16)

    # ---- padded node features and pooling matrix ----------------------------
    x_p = _pad2(x, np_, d).astype(jnp.bfloat16)
    batch_p = jnp.full((np_,), -1, jnp.int32).at[:n].set(batch.astype(jnp.int32))
    pool = (batch_p[None, :] == jnp.arange(gp, dtype=jnp.int32)[:, None])
    pool = pool.astype(jnp.bfloat16)

    # ---- fold inference BatchNorm into the first linear of each conv MLP ----
    w1s, b1s, w2s, b2s = [], [], [], []
    for prm in conv_params:
        scale = prm["gamma"] * jax.lax.rsqrt(prm["var"] + BN_EPS)     # [1, H]
        w1 = prm["w1"] * scale
        b1 = (prm["b1"] - prm["mean"]) * scale + prm["beta"]
        w1s.append(_pad2(w1, d, d))
        b1s.append(_pad2(b1, 1, d))
        w2s.append(_pad2(prm["w2"], d, d))
        b2s.append(_pad2(prm["b2"], 1, d))
    w1s = jnp.stack(w1s).astype(jnp.bfloat16)     # [L, D, D]
    b1s = jnp.stack(b1s)                          # [L, 1, D] f32
    w2s = jnp.stack(w2s).astype(jnp.bfloat16)     # [L, D, D]
    b2s = jnp.stack(b2s)                          # [L, 1, D] f32

    mw1 = _pad2(mlp_params["w1"], d, d).astype(jnp.bfloat16)
    mb1 = _pad2(mlp_params["b1"], 1, d)
    mw2 = _pad2(mlp_params["w2"], d, op).astype(jnp.bfloat16)
    mb2 = _pad2(mlp_params["b2"], 1, op)

    grid = (num_layers, np_ // tm, np_ // tk)

    # Advisory cost estimate so XLA schedules the scatter-add sensibly.
    flops = (num_layers * (2 * np_ * np_ * d + 4 * np_ * d * d)
             + 2 * gp * np_ * d + 2 * gp * d * d + 2 * gp * d * op)
    bytes_accessed = (num_layers * np_ * np_ * 2 + np_ * d * 2 + gp * np_ * 2
                      + num_layers * (2 * d * d * 2 + 2 * d * 4)
                      + d * d * 2 + d * op * 2 + (d + op) * 4 + gp * op * 4)
    cost = pl.CostEstimate(flops=int(flops), transcendentals=0,
                           bytes_accessed=int(bytes_accessed))

    # VMEM budget: double-buffered tiles + resident operands + scratch.
    vmem_est = (2 * tm * tk * 2                        # A_hat tiles
                + 2 * tk * d * 2                       # x tiles
                + 2 * gp * tm * 2                      # pooling tiles
                + 2 * (2 * d * d * 2 + 2 * d * 4)      # per-layer weights/biases
                + 2 * (d * d * 2 + d * op * 2 + (d + op) * 4)  # final MLP
                + 2 * gp * op * 4                      # output block
                + n_slots * np_ * d * 2                # ping-pong buffer
                + tm * d * 4 + gp * d * 4)             # accumulators
    cp_kwargs = {}
    if vmem_est > 32 * 1024 * 1024:            # only override the default when needed
        cp_kwargs["vmem_limit_bytes"] = int(vmem_est * 1.25)

    out = pl.pallas_call(
        _make_fused_kernel(tm, tk, n_slots),
        out_shape=jax.ShapeDtypeStruct((gp, op), jnp.float32),
        grid_spec=pltpu.PrefetchScalarGridSpec(
            num_scalar_prefetch=0,
            grid=grid,
            in_specs=[
                pl.BlockSpec((tm, tk), lambda l, i, k: (i, k)),          # A_hat tile
                pl.BlockSpec((tk, d), lambda l, i, k: (k, 0)),           # x tile (layer 0)
                pl.BlockSpec((gp, tm), lambda l, i, k: (0, i)),          # pooling tile
                pl.BlockSpec((None, d, d), lambda l, i, k: (l, 0, 0)),   # w1 (per layer)
                pl.BlockSpec((None, 1, d), lambda l, i, k: (l, 0, 0)),   # b1
                pl.BlockSpec((None, d, d), lambda l, i, k: (l, 0, 0)),   # w2
                pl.BlockSpec((None, 1, d), lambda l, i, k: (l, 0, 0)),   # b2
                pl.BlockSpec((d, d), lambda l, i, k: (0, 0)),            # final MLP w1
                pl.BlockSpec((1, d), lambda l, i, k: (0, 0)),            # final MLP b1
                pl.BlockSpec((d, op), lambda l, i, k: (0, 0)),           # final MLP w2
                pl.BlockSpec((1, op), lambda l, i, k: (0, 0)),           # final MLP b2
            ],
            out_specs=pl.BlockSpec((gp, op), lambda l, i, k: (0, 0)),
            scratch_shapes=[
                pltpu.VMEM((n_slots, np_, d), jnp.bfloat16),  # layer ping-pong buffer
                pltpu.VMEM((tm, d), jnp.float32),             # aggregation accumulator
                pltpu.VMEM((gp, d), jnp.float32),             # pooled accumulator
            ]),
        compiler_params=pltpu.CompilerParams(
            dimension_semantics=("arbitrary", "arbitrary", "arbitrary"),
            **cp_kwargs),
        cost_estimate=cost,
    )(a_hat, x_p, pool, w1s, b1s, w2s, b2s, mw1, mb1, mw2, mb2)

    return out[:num_graphs, :out_c]


# ----------------------------------------------------------------------------
# Pure-JAX reference (f32, inference mode) used to sanity-check the kernel.
# ----------------------------------------------------------------------------
def reference_forward(x, edge_index, batch, conv_params, mlp_params, num_graphs):
    n = x.shape[0]
    src, dst = edge_index[0], edge_index[1]
    a_hat = (jnp.zeros((n, n), jnp.float32).at[dst, src].add(1.0)
             + jnp.eye(n, dtype=jnp.float32))
    h = x
    for prm in conv_params:
        z = a_hat @ h
        scale = prm["gamma"] * jax.lax.rsqrt(prm["var"] + BN_EPS)
        h = jnp.maximum((z @ prm["w1"] + prm["b1"] - prm["mean"]) * scale
                        + prm["beta"], 0.0)
        h = jnp.maximum(h @ prm["w2"] + prm["b2"], 0.0)
    pooled = jnp.zeros((num_graphs, h.shape[1]), jnp.float32).at[batch].add(h)
    hp = jnp.maximum(pooled @ mlp_params["w1"] + mlp_params["b1"], 0.0)
    return hp @ mlp_params["w2"] + mlp_params["b2"]


if __name__ == "__main__":
    # Small synthetic graph problem
    in_channels, hidden_channels, out_channels, num_layers = 8, 32, 4, 2
    num_nodes, num_edges, num_graphs = 16, 32, 2

    key = jax.random.PRNGKey(0)
    key, kx, ke = jax.random.split(key, 3)

    x = jax.random.normal(kx, (num_nodes, in_channels), jnp.float32)
    edge_index = jax.random.randint(ke, (2, num_edges), 0, num_nodes, jnp.int32)
    batch = jnp.concatenate([
        jnp.zeros((num_nodes // 2,), jnp.int32),
        jnp.ones((num_nodes - num_nodes // 2,), jnp.int32),
    ])

    conv_params, mlp_params = make_params(
        key, in_channels, hidden_channels, out_channels, num_layers)

    out = net_forward(x, edge_index, batch, conv_params, mlp_params,
                      num_graphs=num_graphs)
    out = jax.block_until_ready(out)
    assert out.shape == (num_graphs, out_channels)
    assert bool(jnp.all(jnp.isfinite(out)))

    ref = reference_forward(x, edge_index, batch, conv_params, mlp_params,
                            num_graphs)
    assert bool(jnp.allclose(out, ref, rtol=1e-1, atol=1e-1)), (out, ref)
    print("KERNEL_OK")
</pallas_src>

<mosaic_0001>
module attributes {stable_mosaic.version = 11 : i64} {
  func.func @kernel(%arg0: i32, %arg1: i32, %arg2: i32, %arg3: memref<128x128xbf16, #tpu.memory_space<vmem>>, %arg4: memref<128x128xbf16, #tpu.memory_space<vmem>>, %arg5: memref<8x128xbf16, #tpu.memory_space<vmem>>, %arg6: memref<1x128x128xbf16, #tpu.memory_space<vmem>>, %arg7: memref<1x1x128xf32, #tpu.memory_space<vmem>>, %arg8: memref<1x128x128xbf16, #tpu.memory_space<vmem>>, %arg9: memref<1x1x128xf32, #tpu.memory_space<vmem>>, %arg10: memref<128x128xbf16, #tpu.memory_space<vmem>>, %arg11: memref<1x128xf32, #tpu.memory_space<vmem>>, %arg12: memref<128x128xbf16, #tpu.memory_space<vmem>>, %arg13: memref<1x128xf32, #tpu.memory_space<vmem>>, %arg14: memref<8x128xf32, #tpu.memory_space<vmem>>, %arg15: memref<2x128x128xbf16, #tpu.memory_space<vmem>>, %arg16: memref<128x128xf32, #tpu.memory_space<vmem>>, %arg17: memref<8x128xf32, #tpu.memory_space<vmem>>) attributes {dimension_semantics = [#tpu.dimension_semantics<arbitrary>, #tpu.dimension_semantics<arbitrary>, #tpu.dimension_semantics<arbitrary>], iteration_bounds = array<i64: 2, 1, 1>, scalar_prefetch = 0 : i64, scratch_operands = 3 : i64, tpu.core_type = #tpu.core_type<tc>, window_params = [{transform_indices = @transform_0, window_bounds = array<i64: 128, 128>}, {transform_indices = @transform_1, window_bounds = array<i64: 128, 128>}, {transform_indices = @transform_2, window_bounds = array<i64: 8, 128>}, {transform_indices = @transform_3, window_bounds = array<i64: 1, 128, 128>}, {transform_indices = @transform_4, window_bounds = array<i64: 1, 1, 128>}, {transform_indices = @transform_5, window_bounds = array<i64: 1, 128, 128>}, {transform_indices = @transform_6, window_bounds = array<i64: 1, 1, 128>}, {pipeline_mode = #tpu.pipeline_mode<synchronous>, transform_indices = @transform_7, window_bounds = array<i64: 128, 128>}, {pipeline_mode = #tpu.pipeline_mode<synchronous>, transform_indices = @transform_8, window_bounds = array<i64: 1, 128>}, {pipeline_mode = #tpu.pipeline_mode<synchronous>, transform_indices = @transform_9, window_bounds = array<i64: 128, 128>}, {pipeline_mode = #tpu.pipeline_mode<synchronous>, transform_indices = @transform_10, window_bounds = array<i64: 1, 128>}, {pipeline_mode = #tpu.pipeline_mode<synchronous>, transform_indices = @transform_11, window_bounds = array<i64: 8, 128>}]} {
    %c128_i32 = arith.constant 128 : i32
    %0 = arith.muli %arg1, %c128_i32 : i32
    %1 = tpu.assume_multiple %0, 128 : i32
    %c128_i32_0 = arith.constant 128 : i32
    %2 = arith.muli %arg2, %c128_i32_0 : i32
    %3 = tpu.assume_multiple %2, 128 : i32
    %c0_i32 = arith.constant 0 : i32
    %4 = arith.cmpi eq, %arg0, %c0_i32 : i32
    %c0_i32_1 = arith.constant 0 : i32
    %5 = arith.cmpi eq, %arg1, %c0_i32_1 : i32
    %6 = arith.andi %4, %5 : i1
    %c0_i32_2 = arith.constant 0 : i32
    %7 = arith.cmpi eq, %arg2, %c0_i32_2 : i32
    %8 = arith.andi %6, %7 : i1
    %9 = arith.extui %8 : i1 to i32
    %c0_i32_3 = arith.constant 0 : i32
    %10 = arith.cmpi ne, %9, %c0_i32_3 : i32
    scf.if %10 {
      %cst = arith.constant 0.000000e+00 : f32
      %35 = vector.broadcast %cst : f32 to vector<8x128xf32>
      %c0 = arith.constant 0 : index
      %c0_18 = arith.constant 0 : index
      %36 = vector.load %arg17[%c0, %c0_18] : memref<8x128xf32, #tpu.memory_space<vmem>>, vector<8x128xf32>
      tpu.vector_store %arg17[%c0, %c0_18], %35 {strides = array<i32>} : memref<8x128xf32, #tpu.memory_space<vmem>>, vector<8x128xf32>,
    } else {
    }
    %c0_i32_4 = arith.constant 0 : i32
    %11 = arith.cmpi eq, %arg2, %c0_i32_4 : i32
    %12 = arith.extui %11 : i1 to i32
    %c0_i32_5 = arith.constant 0 : i32
    %13 = arith.cmpi ne, %12, %c0_i32_5 : i32
    scf.if %13 {
      %cst = arith.constant 0.000000e+00 : f32
      %35 = vector.broadcast %cst : f32 to vector<128x128xf32>
      %c0 = arith.constant 0 : index
      %c0_18 = arith.constant 0 : index
      %36 = vector.load %arg16[%c0, %c0_18] : memref<128x128xf32, #tpu.memory_space<vmem>>, vector<128x128xf32>
      tpu.vector_store %arg16[%c0, %c0_18], %35 {strides = array<i32>} : memref<128x128xf32, #tpu.memory_space<vmem>>, vector<128x128xf32>,
    } else {
    }
    %c0_i32_6 = arith.constant 0 : i32
    %14 = arith.cmpi eq, %arg0, %c0_i32_6 : i32
    %15 = arith.extui %14 : i1 to i32
    %c0_i32_7 = arith.constant 0 : i32
    %16 = arith.cmpi ne, %15, %c0_i32_7 : i32
    scf.if %16 {
      %c0 = arith.constant 0 : index
      %c0_18 = arith.constant 0 : index
      %35 = vector.load %arg16[%c0, %c0_18] : memref<128x128xf32, #tpu.memory_space<vmem>>, vector<128x128xf32>
      %c0_19 = arith.constant 0 : index
      %c0_20 = arith.constant 0 : index
      %36 = vector.load %arg3[%c0_19, %c0_20] : memref<128x128xbf16, #tpu.memory_space<vmem>>, vector<128x128xbf16>
      %c0_21 = arith.constant 0 : index
      %c0_22 = arith.constant 0 : index
      %37 = vector.load %arg4[%c0_21, %c0_22] : memref<128x128xbf16, #tpu.memory_space<vmem>>, vector<128x128xbf16>
      %cst = arith.constant dense<0.000000e+00> : vector<128x128xf32>
      %38 = tpu.matmul %36, %37, %cst {dimension_numbers = #tpu.dot_dimension_numbers<[1], [0], [0], [1], [0, 0, 1, 1], [], []>} : vector<128x128xbf16>, vector<128x128xbf16>, vector<128x128xf32> -> vector<128x128xf32>
      %39 = arith.addf %35, %38 : vector<128x128xf32>
      %c0_23 = arith.constant 0 : index
      %c0_24 = arith.constant 0 : index
      %40 = vector.load %arg16[%c0_23, %c0_24] : memref<128x128xf32, #tpu.memory_space<vmem>>, vector<128x128xf32>
      tpu.vector_store %arg16[%c0_23, %c0_24], %39 {strides = array<i32>} : memref<128x128xf32, #tpu.memory_space<vmem>>, vector<128x128xf32>,
    } else {
    }
    %c0_i32_8 = arith.constant 0 : i32
    %17 = arith.cmpi sgt, %arg0, %c0_i32_8 : i32
    %18 = arith.extui %17 : i1 to i32
    %c0_i32_9 = arith.constant 0 : i32
    %19 = arith.cmpi ne, %18, %c0_i32_9 : i32
    scf.if %19 {
      %c1_i32_18 = arith.constant 1 : i32
      %35 = arith.addi %arg0, %c1_i32_18 : i32
      %c2_i32 = arith.constant 2 : i32
      %c0_i32_19 = arith.constant 0 : i32
      %36 = arith.cmpi eq, %c2_i32, %c0_i32_19 : i32
      %c1_i32_20 = arith.constant 1 : i32
      %37 = arith.select %36, %c1_i32_20, %c2_i32 : i32
      %38 = arith.remsi %35, %37 : i32
      %c0_i32_21 = arith.constant 0 : i32
      %39 = arith.cmpi ne, %38, %c0_i32_21 : i32
      %c0_i32_22 = arith.constant 0 : i32
      %40 = arith.cmpi slt, %38, %c0_i32_22 : i32
      %c0_i32_23 = arith.constant 0 : i32
      %41 = arith.cmpi slt, %37, %c0_i32_23 : i32
      %42 = arith.xori %40, %41 : i1
      %43 = arith.andi %42, %39 : i1
      %44 = arith.addi %38, %37 : i32
      %45 = arith.select %43, %44, %38 : i32
      %46 = arith.index_cast %45 : i32 to index
      %47 = arith.index_cast %3 : i32 to index
      %c0 = arith.constant 0 : index
      %48 = vector.load %arg15[%46, %47, %c0] : memref<2x128x128xbf16, #tpu.memory_space<vmem>>, vector<1x128x128xbf16>
      %49 = vector.shape_cast %48 : vector<1x128x128xbf16> to vector<128x128xbf16>
      %c0_24 = arith.constant 0 : index
      %c0_25 = arith.constant 0 : index
      %50 = vector.load %arg16[%c0_24, %c0_25] : memref<128x128xf32, #tpu.memory_space<vmem>>, vector<128x128xf32>
      %c0_26 = arith.constant 0 : index
      %c0_27 = arith.constant 0 : index
      %51 = vector.load %arg3[%c0_26, %c0_27] : memref<128x128xbf16, #tpu.memory_space<vmem>>, vector<128x128xbf16>
      %cst = arith.constant dense<0.000000e+00> : vector<128x128xf32>
      %52 = tpu.matmul %51, %49, %cst {dimension_numbers = #tpu.dot_dimension_numbers<[1], [0], [0], [1], [0, 0, 1, 1], [], []>} : vector<128x128xbf16>, vector<128x128xbf16>, vector<128x128xf32> -> vector<128x128xf32>
      %53 = arith.addf %50, %52 : vector<128x128xf32>
      %c0_28 = arith.constant 0 : index
      %c0_29 = arith.constant 0 : index
      %54 = vector.load %arg16[%c0_28, %c0_29] : memref<128x128xf32, #tpu.memory_space<vmem>>, vector<128x128xf32>
      tpu.vector_store %arg16[%c0_28, %c0_29], %53 {strides = array<i32>} : memref<128x128xf32, #tpu.memory_space<vmem>>, vector<128x128xf32>,
    } else {
    }
    %c0_i32_10 = arith.constant 0 : i32
    %20 = arith.cmpi eq, %arg2, %c0_i32_10 : i32
    %21 = arith.extui %20 : i1 to i32
    %c0_i32_11 = arith.constant 0 : i32
    %22 = arith.cmpi ne, %21, %c0_i32_11 : i32
    scf.if %22 {
      %c0 = arith.constant 0 : index
      %c0_18 = arith.constant 0 : index
      %35 = vector.load %arg16[%c0, %c0_18] : memref<128x128xf32, #tpu.memory_space<vmem>>, vector<128x128xf32>
      %36 = arith.truncf %35 : vector<128x128xf32> to vector<128x128xbf16>
      %c0_19 = arith.constant 0 : index
      %c0_20 = arith.constant 0 : index
      %c0_21 = arith.constant 0 : index
      %37 = vector.load %arg6[%c0_19, %c0_20, %c0_21] : memref<1x128x128xbf16, #tpu.memory_space<vmem>>, vector<1x128x128xbf16>
      %38 = vector.shape_cast %37 : vector<1x128x128xbf16> to vector<128x128xbf16>
      %cst = arith.constant dense<0.000000e+00> : vector<128x128xf32>
      %39 = tpu.matmul %36, %38, %cst {dimension_numbers = #tpu.dot_dimension_numbers<[1], [0], [0], [1], [0, 0, 1, 1], [], []>} : vector<128x128xbf16>, vector<128x128xbf16>, vector<128x128xf32> -> vector<128x128xf32>
      %c0_22 = arith.constant 0 : index
      %c0_23 = arith.constant 0 : index
      %c0_24 = arith.constant 0 : index
      %40 = vector.load %arg7[%c0_22, %c0_23, %c0_24] : memref<1x1x128xf32, #tpu.memory_space<vmem>>, vector<1x1x128xf32>
      %41 = vector.shape_cast %40 : vector<1x1x128xf32> to vector<1x128xf32>
      %42 = vector.broadcast %41 : vector<1x128xf32> to vector<128x128xf32>
      %43 = arith.addf %39, %42 : vector<128x128xf32>
      %cst_25 = arith.constant 0.000000e+00 : f32
      %44 = vector.broadcast %cst_25 : f32 to vector<128x128xf32>
      %45 = arith.maximumf %43, %44 : vector<128x128xf32>
      %46 = arith.truncf %45 : vector<128x128xf32> to vector<128x128xbf16>
      %c0_26 = arith.constant 0 : index
      %c0_27 = arith.constant 0 : index
      %c0_28 = arith.constant 0 : index
      %47 = vector.load %arg8[%c0_26, %c0_27, %c0_28] : memref<1x128x128xbf16, #tpu.memory_space<vmem>>, vector<1x128x128xbf16>
      %48 = vector.shape_cast %47 : vector<1x128x128xbf16> to vector<128x128xbf16>
      %cst_29 = arith.constant dense<0.000000e+00> : vector<128x128xf32>
      %49 = tpu.matmul %46, %48, %cst_29 {dimension_numbers = #tpu.dot_dimension_numbers<[1], [0], [0], [1], [0, 0, 1, 1], [], []>} : vector<128x128xbf16>, vector<128x128xbf16>, vector<128x128xf32> -> vector<128x128xf32>
      %c0_30 = arith.constant 0 : index
      %c0_31 = arith.constant 0 : index
      %c0_32 = arith.constant 0 : index
      %50 = vector.load %arg9[%c0_30, %c0_31, %c0_32] : memref<1x1x128xf32, #tpu.memory_space<vmem>>, vector<1x1x128xf32>
      %51 = vector.shape_cast %50 : vector<1x1x128xf32> to vector<1x128xf32>
      %52 = vector.broadcast %51 : vector<1x128xf32> to vector<128x128xf32>
      %53 = arith.addf %49, %52 : vector<128x128xf32>
      %cst_33 = arith.constant 0.000000e+00 : f32
      %54 = vector.broadcast %cst_33 : f32 to vector<128x128xf32>
      %55 = arith.maximumf %53, %54 : vector<128x128xf32>
      %56 = arith.truncf %55 : vector<128x128xf32> to vector<128x128xbf16>
      %c2_i32 = arith.constant 2 : i32
      %c0_i32_34 = arith.constant 0 : i32
      %57 = arith.cmpi eq, %c2_i32, %c0_i32_34 : i32
      %c1_i32_35 = arith.constant 1 : i32
      %58 = arith.select %57, %c1_i32_35, %c2_i32 : i32
      %59 = arith.remsi %arg0, %58 : i32
      %c0_i32_36 = arith.constant 0 : i32
      %60 = arith.cmpi ne, %59, %c0_i32_36 : i32
      %c0_i32_37 = arith.constant 0 : i32
      %61 = arith.cmpi slt, %59, %c0_i32_37 : i32
      %c0_i32_38 = arith.constant 0 : i32
      %62 = arith.cmpi slt, %58, %c0_i32_38 : i32
      %63 = arith.xori %61, %62 : i1
      %64 = arith.andi %63, %60 : i1
      %65 = arith.addi %59, %58 : i32
      %66 = arith.select %64, %65, %59 : i32
      %67 = arith.index_cast %66 : i32 to index
      %68 = arith.index_cast %1 : i32 to index
      %c0_39 = arith.constant 0 : index
      %69 = vector.load %arg15[%67, %68, %c0_39] : memref<2x128x128xbf16, #tpu.memory_space<vmem>>, vector<1x128x128xbf16>
      %70 = vector.shape_cast %69 : vector<1x128x128xbf16> to vector<128x128xbf16>
      %71 = vector.shape_cast %56 : vector<128x128xbf16> to vector<1x128x128xbf16>
      tpu.vector_store %arg15[%67, %68, %c0_39], %71 {strides = array<i32>} : memref<2x128x128xbf16, #tpu.memory_space<vmem>>, vector<1x128x128xbf16>,
    } else {
    }
    %c1_i32 = arith.constant 1 : i32
    %23 = arith.cmpi eq, %arg0, %c1_i32 : i32
    %c0_i32_12 = arith.constant 0 : i32
    %24 = arith.cmpi eq, %arg2, %c0_i32_12 : i32
    %25 = arith.andi %23, %24 : i1
    %26 = arith.extui %25 : i1 to i32
    %c0_i32_13 = arith.constant 0 : i32
    %27 = arith.cmpi ne, %26, %c0_i32_13 : i32
    scf.if %27 {
      %c2_i32 = arith.constant 2 : i32
      %c0_i32_18 = arith.constant 0 : i32
      %35 = arith.cmpi eq, %c2_i32, %c0_i32_18 : i32
      %c1_i32_19 = arith.constant 1 : i32
      %36 = arith.select %35, %c1_i32_19, %c2_i32 : i32
      %37 = arith.remsi %arg0, %36 : i32
      %c0_i32_20 = arith.constant 0 : i32
      %38 = arith.cmpi ne, %37, %c0_i32_20 : i32
      %c0_i32_21 = arith.constant 0 : i32
      %39 = arith.cmpi slt, %37, %c0_i32_21 : i32
      %c0_i32_22 = arith.constant 0 : i32
      %40 = arith.cmpi slt, %36, %c0_i32_22 : i32
      %41 = arith.xori %39, %40 : i1
      %42 = arith.andi %41, %38 : i1
      %43 = arith.addi %37, %36 : i32
      %44 = arith.select %42, %43, %37 : i32
      %45 = arith.index_cast %44 : i32 to index
      %46 = arith.index_cast %1 : i32 to index
      %c0 = arith.constant 0 : index
      %47 = vector.load %arg15[%45, %46, %c0] : memref<2x128x128xbf16, #tpu.memory_space<vmem>>, vector<1x128x128xbf16>
      %48 = vector.shape_cast %47 : vector<1x128x128xbf16> to vector<128x128xbf16>
      %c0_23 = arith.constant 0 : index
      %c0_24 = arith.constant 0 : index
      %49 = vector.load %arg17[%c0_23, %c0_24] : memref<8x128xf32, #tpu.memory_space<vmem>>, vector<8x128xf32>
      %c0_25 = arith.constant 0 : index
      %c0_26 = arith.constant 0 : index
      %50 = vector.load %arg5[%c0_25, %c0_26] : memref<8x128xbf16, #tpu.memory_space<vmem>>, vector<8x128xbf16>
      %cst = arith.constant dense<0.000000e+00> : vector<8x128xf32>
      %51 = tpu.matmul %50, %48, %cst {dimension_numbers = #tpu.dot_dimension_numbers<[1], [0], [0], [1], [0, 0, 1, 1], [], []>} : vector<8x128xbf16>, vector<128x128xbf16>, vector<8x128xf32> -> vector<8x128xf32>
      %52 = arith.addf %49, %51 : vector<8x128xf32>
      %c0_27 = arith.constant 0 : index
      %c0_28 = arith.constant 0 : index
      %53 = vector.load %arg17[%c0_27, %c0_28] : memref<8x128xf32, #tpu.memory_space<vmem>>, vector<8x128xf32>
      tpu.vector_store %arg17[%c0_27, %c0_28], %52 {strides = array<i32>} : memref<8x128xf32, #tpu.memory_space<vmem>>, vector<8x128xf32>,
    } else {
    }
    %c1_i32_14 = arith.constant 1 : i32
    %28 = arith.cmpi eq, %arg0, %c1_i32_14 : i32
    %c0_i32_15 = arith.constant 0 : i32
    %29 = arith.cmpi eq, %arg1, %c0_i32_15 : i32
    %30 = arith.andi %28, %29 : i1
    %c0_i32_16 = arith.constant 0 : i32
    %31 = arith.cmpi eq, %arg2, %c0_i32_16 : i32
    %32 = arith.andi %30, %31 : i1
    %33 = arith.extui %32 : i1 to i32
    %c0_i32_17 = arith.constant 0 : i32
    %34 = arith.cmpi ne, %33, %c0_i32_17 : i32
    scf.if %34 {
      %c0 = arith.constant 0 : index
      %c0_18 = arith.constant 0 : index
      %35 = vector.load %arg17[%c0, %c0_18] : memref<8x128xf32, #tpu.memory_space<vmem>>, vector<8x128xf32>
      %36 = arith.truncf %35 : vector<8x128xf32> to vector<8x128xbf16>
      %c0_19 = arith.constant 0 : index
      %c0_20 = arith.constant 0 : index
      %37 = vector.load %arg10[%c0_19, %c0_20] : memref<128x128xbf16, #tpu.memory_space<vmem>>, vector<128x128xbf16>
      %cst = arith.constant dense<0.000000e+00> : vector<8x128xf32>
      %38 = tpu.matmul %36, %37, %cst {dimension_numbers = #tpu.dot_dimension_numbers<[1], [0], [0], [1], [0, 0, 1, 1], [], []>} : vector<8x128xbf16>, vector<128x128xbf16>, vector<8x128xf32> -> vector<8x128xf32>
      %c0_21 = arith.constant 0 : index
      %c0_22 = arith.constant 0 : index
      %39 = vector.load %arg11[%c0_21, %c0_22] : memref<1x128xf32, #tpu.memory_space<vmem>>, vector<1x128xf32>
      %40 = vector.broadcast %39 : vector<1x128xf32> to vector<8x128xf32>
      %41 = arith.addf %38, %40 : vector<8x128xf32>
      %cst_23 = arith.constant 0.000000e+00 : f32
      %42 = vector.broadcast %cst_23 : f32 to vector<8x128xf32>
      %43 = arith.maximumf %41, %42 : vector<8x128xf32>
      %44 = arith.truncf %43 : vector<8x128xf32> to vector<8x128xbf16>
      %c0_24 = arith.constant 0 : index
      %c0_25 = arith.constant 0 : index
      %45 = vector.load %arg12[%c0_24, %c0_25] : memref<128x128xbf16, #tpu.memory_space<vmem>>, vector<128x128xbf16>
      %cst_26 = arith.constant dense<0.000000e+00> : vector<8x128xf32>
      %46 = tpu.matmul %44, %45, %cst_26 {dimension_numbers = #tpu.dot_dimension_numbers<[1], [0], [0], [1], [0, 0, 1, 1], [], []>} : vector<8x128xbf16>, vector<128x128xbf16>, vector<8x128xf32> -> vector<8x128xf32>
      %c0_27 = arith.constant 0 : index
      %c0_28 = arith.constant 0 : index
      %47 = vector.load %arg13[%c0_27, %c0_28] : memref<1x128xf32, #tpu.memory_space<vmem>>, vector<1x128xf32>
      %48 = vector.broadcast %47 : vector<1x128xf32> to vector<8x128xf32>
      %49 = arith.addf %46, %48 : vector<8x128xf32>
      %c0_29 = arith.constant 0 : index
      %c0_30 = arith.constant 0 : index
      %50 = vector.load %arg14[%c0_29, %c0_30] : memref<8x128xf32, #tpu.memory_space<vmem>>, vector<8x128xf32>
      tpu.vector_store %arg14[%c0_29, %c0_30], %49 {strides = array<i32>} : memref<8x128xf32, #tpu.memory_space<vmem>>, vector<8x128xf32>,
    } else {
    }
    return
  }
  func.func @transform_0(%arg0: i32, %arg1: i32, %arg2: i32) -> (i32, i32) {
    %c0_i32 = arith.constant 0 : i32
    return %arg1, %arg2 : i32, i32
  }
  func.func @transform_1(%arg0: i32, %arg1: i32, %arg2: i32) -> (i32, i32) {
    %c0_i32 = arith.constant 0 : i32
    %c0_i32_0 = arith.constant 0 : i32
    return %arg2, %c0_i32 : i32, i32
  }
  func.func @transform_2(%arg0: i32, %arg1: i32, %arg2: i32) -> (i32, i32) {
    %c0_i32 = arith.constant 0 : i32
    %c0_i32_0 = arith.constant 0 : i32
    return %c0_i32, %arg1 : i32, i32
  }
  func.func @transform_3(%arg0: i32, %arg1: i32, %arg2: i32) -> (i32, i32, i32) {
    %c0_i32 = arith.constant 0 : i32
    %c0_i32_0 = arith.constant 0 : i32
    %c0_i32_1 = arith.constant 0 : i32
    return %arg0, %c0_i32, %c0_i32_0 : i32, i32, i32
  }
  func.func @transform_4(%arg0: i32, %arg1: i32, %arg2: i32) -> (i32, i32, i32) {
    %c0_i32 = arith.constant 0 : i32
    %c0_i32_0 = arith.constant 0 : i32
    %c0_i32_1 = arith.constant 0 : i32
    return %arg0, %c0_i32, %c0_i32_0 : i32, i32, i32
  }
  func.func @transform_5(%arg0: i32, %arg1: i32, %arg2: i32) -> (i32, i32, i32) {
    %c0_i32 = arith.constant 0 : i32
    %c0_i32_0 = arith.constant 0 : i32
    %c0_i32_1 = arith.constant 0 : i32
    return %arg0, %c0_i32, %c0_i32_0 : i32, i32, i32
  }
  func.func @transform_6(%arg0: i32, %arg1: i32, %arg2: i32) -> (i32, i32, i32) {
    %c0_i32 = arith.constant 0 : i32
    %c0_i32_0 = arith.constant 0 : i32
    %c0_i32_1 = arith.constant 0 : i32
    return %arg0, %c0_i32, %c0_i32_0 : i32, i32, i32
  }
  func.func @transform_7(%arg0: i32, %arg1: i32, %arg2: i32) -> (i32, i32) {
    %c0_i32 = arith.constant 0 : i32
    %c0_i32_0 = arith.constant 0 : i32
    %c0_i32_1 = arith.constant 0 : i32
    return %c0_i32, %c0_i32_0 : i32, i32
  }
  func.func @transform_8(%arg0: i32, %arg1: i32, %arg2: i32) -> (i32, i32) {
    %c0_i32 = arith.constant 0 : i32
    %c0_i32_0 = arith.constant 0 : i32
    %c0_i32_1 = arith.constant 0 : i32
    return %c0_i32, %c0_i32_0 : i32, i32
  }
  func.func @transform_9(%arg0: i32, %arg1: i32, %arg2: i32) -> (i32, i32) {
    %c0_i32 = arith.constant 0 : i32
    %c0_i32_0 = arith.constant 0 : i32
    %c0_i32_1 = arith.constant 0 : i32
    return %c0_i32, %c0_i32_0 : i32, i32
  }
  func.func @transform_10(%arg0: i32, %arg1: i32, %arg2: i32) -> (i32, i32) {
    %c0_i32 = arith.constant 0 : i32
    %c0_i32_0 = arith.constant 0 : i32
    %c0_i32_1 = arith.constant 0 : i32
    return %c0_i32, %c0_i32_0 : i32, i32
  }
  func.func @transform_11(%arg0: i32, %arg1: i32, %arg2: i32) -> (i32, i32) {
    %c0_i32 = arith.constant 0 : i32
    %c0_i32_0 = arith.constant 0 : i32
    %c0_i32_1 = arith.constant 0 : i32
    return %c0_i32, %c0_i32_0 : i32, i32
  }
}

</mosaic_0001>

<llo_original>
// kernel: net_forward.1
$region0: #{net_forward.1}
  #allocation0 [shape = 'u32[]', space=smem, size = 0x4, offset = 0x4, fixed_abs, tag = 'smem constant byte address 0x4 - core index']
  #allocation1 [shape = 'u32[72,128]{1,0:T(1,128)}', space=vmem, size = 0x9000, scoped, tag = 'internal scratch']
  #allocation2 [shape = 'bf16[2,128,128]{2,1,0:T(8,128)(2,1)}', space=vmem, size = 0x10000, scoped, tag = 'scratch operand']
  #allocation3 [shape = 'f32[128,128]{1,0:T(8,128)}', space=vmem, size = 0x10000, scoped, tag = 'scratch operand']
  #allocation4 [shape = 'f32[8,128]{1,0:T(8,128)}', space=vmem, size = 0x1000, scoped, tag = 'scratch operand']
  %s0 = inlined_call_operand.vmem [shape: bf16[128,128], index: 0, kind: input, shape index: {}]
  %s1 = inlined_call_operand.vmem [shape: bf16[128,128], index: 1, kind: input, shape index: {}]
  %s2 = inlined_call_operand.vmem [shape: bf16[8,128], index: 2, kind: input, shape index: {}]
  %s3 = inlined_call_operand.vmem [shape: bf16[2,128,128], index: 3, kind: input, shape index: {}]
  %s4 = inlined_call_operand.vmem [shape: f32[2,1,128], index: 4, kind: input, shape index: {}]
  %s5 = inlined_call_operand.vmem [shape: bf16[2,128,128], index: 5, kind: input, shape index: {}]
  %s6 = inlined_call_operand.vmem [shape: f32[2,1,128], index: 6, kind: input, shape index: {}]
  %s7 = inlined_call_operand.vmem [shape: bf16[128,128], index: 7, kind: input, shape index: {}]
  %s8 = inlined_call_operand.vmem [shape: f32[1,128], index: 8, kind: input, shape index: {}]
  %s9 = inlined_call_operand.vmem [shape: bf16[128,128], index: 9, kind: input, shape index: {}]
  %s10 = inlined_call_operand.vmem [shape: f32[1,128], index: 10, kind: input, shape index: {}]
  %s11 = inlined_call_operand.vmem [shape: f32[8,128], index: 11, kind: output, shape index: {}]
  %s12 = sld [smem:[#allocation0]]
  $region105: #{net_forward.1} parent=0
    _
  %s14 = ssub.s32 1, %s12
  %s15 = scalar_select 0, %s14, %s12
  loop: start=0, step=1, limit=4
  $region2: #{net_forward.1} parent=0 // loop_pre_header
    _
  $region3: #{net_forward.1} parent=0 // loop_header
    %s17 = sphi 0, %s21
    %p18 = scmp.ge.s32.totalorder %s17, 4
    %s24 = sphi 0, %s43
    %s25 = sphi 0, %s39
    %s26 = sphi 0, %s35
    %s27 = sphi 0, %s24
    %s28 = sphi 0, %s25
    %s29 = sphi 0, %s26
    %s30 = sphi 0, %s27
    %s31 = sphi 0, %s28
    %s32 = sphi 0, %s29
    %s48 = sphi 0, %s50
    %s51 = sphi 0, %s48
    %s52 = sphi 0, %s51
    %s68 = sphi 0, %s52
    %s74 = sphi 0, %s76
    %s77 = sphi 0, %s74
    %s78 = sphi 0, %s77
    %s94 = sphi 0, %s78
    %s100 = sphi 0, %s102
    %s103 = sphi 0, %s100
    %s104 = sphi 0, %s103
    %s120 = sphi 0, %s104
    %s126 = sphi 0, %s128
    %s129 = sphi 0, %s126
    %s130 = sphi 0, %s129
    %s146 = sphi 0, %s130
    %s152 = sphi 0, %s154
    %s155 = sphi 0, %s152
    %s156 = sphi 0, %s155
    %s172 = sphi 0, %s156
    %s178 = sphi 0, %s180
    %s181 = sphi 0, %s178
    %s182 = sphi 0, %s181
    %s198 = sphi 0, %s182
    %s204 = sphi 0, %s206
    %s207 = sphi 0, %s204
    %s208 = sphi 0, %s207
    %s224 = sphi 0, %s208
    %s228 = sphi 0, %s228
    %s230 = sphi 0, %s228
    %s231 = sphi 0, %s230
    %s245 = sphi 0, %s231
    %s249 = sphi 0, %s249
    %s251 = sphi 0, %s249
    %s252 = sphi 0, %s251
    %s266 = sphi 0, %s252
    %s270 = sphi 0, %s270
    %s272 = sphi 0, %s270
    %s273 = sphi 0, %s272
    %s287 = sphi 0, %s273
    %s291 = sphi 0, %s291
    %s293 = sphi 0, %s291
    %s294 = sphi 0, %s293
    %s308 = sphi 0, %s294
    %s312 = sphi 0, %s312
    %s314 = sphi 0, %s312
    %s315 = sphi 0, %s314
    %s329 = sphi 0, %s315
  $region4: #{net_forward.1} parent=0 // loop_header_branch
    %20 = sbr.rel (%p18) target = $region8
  $region5: #{net_forward.1} parent=0 // loop_body
    %s22 = ssub.s32 %s17, 1
    %s23 = ssub.s32 %s17, 2
    %s33 = sadd.s32 1, %s26
    %p34 = scmp.ge.s32.totalorder %s33, 1
    %s35 = scalar_select %p34, 0, %s33
    %s36 = sadd.s32 1, %s25
    %s37 = scalar_select %p34, %s36, %s25
    %p38 = scmp.ge.s32.totalorder %s37, 1
    %s39 = scalar_select %p38, 0, %s37
    %s40 = sadd.s32 1, %s24
    %s41 = scalar_select %p38, %s40, %s24
    %p42 = scmp.ge.s32.totalorder %s41, 2
    %s43 = scalar_select %p42, 0, %s41
    %s44 = ssub.s32 %s25, %s39
    %s45 = ssub.s32 %s26, %s35
    %s46 = sor.u32 %s44, %s45
    %p47 = scmp.eq.s32.totalorder %s46, 0
    %s49 = sadd.s32 %s48, 1
    %s50 = scalar_select %p47, %s48, %s49
    %p53 = pneg %p47
    %p54 = scmp.eq.s32.totalorder %s17, 1
    %p55 = por %p53, %p54
    %p56 = scmp.ne.s32.totalorder %s48, %s51
    %p57 = scmp.eq.s32.totalorder %s17, 0
    %p58 = por %p56, %p57
    %p59 = scmp.ne.s32.totalorder %s48, %s51
    %p60 = scmp.eq.s32.totalorder %s22, 1
    %p61 = por %p59, %p60
    %p62 = scmp.ne.s32.totalorder %s51, %s52
    %p63 = scmp.eq.s32.totalorder %s22, 0
    %p64 = por %p62, %p63
    %p65 = scmp.ne.s32.totalorder %s51, %s52
    %p66 = scmp.eq.s32.totalorder %s23, 1
    %p67 = por %p65, %p66
    %p69 = scmp.ne.s32.totalorder %s52, %s68
    %p70 = scmp.eq.s32.totalorder %s23, 0
    %p71 = por %p69, %p70
    %s72 = ssub.s32 %s26, %s35
    %p73 = scmp.eq.s32.totalorder %s72, 0
    %s75 = sadd.s32 %s74, 1
    %s76 = scalar_select %p73, %s74, %s75
    %p79 = pneg %p73
    %p80 = scmp.eq.s32.totalorder %s17, 1
    %p81 = por %p79, %p80
    %p82 = scmp.ne.s32.totalorder %s74, %s77
    %p83 = scmp.eq.s32.totalorder %s17, 0
    %p84 = por %p82, %p83
    %p85 = scmp.ne.s32.totalorder %s74, %s77
    %p86 = scmp.eq.s32.totalorder %s22, 1
    %p87 = por %p85, %p86
    %p88 = scmp.ne.s32.totalorder %s77, %s78
    %p89 = scmp.eq.s32.totalorder %s22, 0
    %p90 = por %p88, %p89
    %p91 = scmp.ne.s32.totalorder %s77, %s78
    %p92 = scmp.eq.s32.totalorder %s23, 1
    %p93 = por %p91, %p92
    %p95 = scmp.ne.s32.totalorder %s78, %s94
    %p96 = scmp.eq.s32.totalorder %s23, 0
    %p97 = por %p95, %p96
    %s98 = ssub.s32 %s25, %s39
    %p99 = scmp.eq.s32.totalorder %s98, 0
    %s101 = sadd.s32 %s100, 1
    %s102 = scalar_select %p99, %s100, %s101
    %p105 = pneg %p99
    %p106 = scmp.eq.s32.totalorder %s17, 1
    %p107 = por %p105, %p106
    %p108 = scmp.ne.s32.totalorder %s100, %s103
    %p109 = scmp.eq.s32.totalorder %s17, 0
    %p110 = por %p108, %p109
    %p111 = scmp.ne.s32.totalorder %s100, %s103
    %p112 = scmp.eq.s32.totalorder %s22, 1
    %p113 = por %p111, %p112
    %p114 = scmp.ne.s32.totalorder %s103, %s104
    %p115 = scmp.eq.s32.totalorder %s22, 0
    %p116 = por %p114, %p115
    %p117 = scmp.ne.s32.totalorder %s103, %s104
    %p118 = scmp.eq.s32.totalorder %s23, 1
    %p119 = por %p117, %p118
    %p121 = scmp.ne.s32.totalorder %s104, %s120
    %p122 = scmp.eq.s32.totalorder %s23, 0
    %p123 = por %p121, %p122
    %s124 = ssub.s32 %s24, %s43
    %p125 = scmp.eq.s32.totalorder %s124, 0
    %s127 = sadd.s32 %s126, 1
    %s128 = scalar_select %p125, %s126, %s127
    %p131 = pneg %p125
    %p132 = scmp.eq.s32.totalorder %s17, 1
    %p133 = por %p131, %p132
    %p134 = scmp.ne.s32.totalorder %s126, %s129
    %p135 = scmp.eq.s32.totalorder %s17, 0
    %p136 = por %p134, %p135
    %p137 = scmp.ne.s32.totalorder %s126, %s129
    %p138 = scmp.eq.s32.totalorder %s22, 1
    %p139 = por %p137, %p138
    %p140 = scmp.ne.s32.totalorder %s129, %s130
    %p141 = scmp.eq.s32.totalorder %s22, 0
    %p142 = por %p140, %p141
    %p143 = scmp.ne.s32.totalorder %s129, %s130
    %p144 = scmp.eq.s32.totalorder %s23, 1
    %p145 = por %p143, %p144
    %p147 = scmp.ne.s32.totalorder %s130, %s146
    %p148 = scmp.eq.s32.totalorder %s23, 0
    %p149 = por %p147, %p148
    %s150 = ssub.s32 %s24, %s43
    %p151 = scmp.eq.s32.totalorder %s150, 0
    %s153 = sadd.s32 %s152, 1
    %s154 = scalar_select %p151, %s152, %s153
    %p157 = pneg %p151
    %p158 = scmp.eq.s32.totalorder %s17, 1
    %p159 = por %p157, %p158
    %p160 = scmp.ne.s32.totalorder %s152, %s155
    %p161 = scmp.eq.s32.totalorder %s17, 0
    %p162 = por %p160, %p161
    %p163 = scmp.ne.s32.totalorder %s152, %s155
    %p164 = scmp.eq.s32.totalorder %s22, 1
    %p165 = por %p163, %p164
    %p166 = scmp.ne.s32.totalorder %s155, %s156
    %p167 = scmp.eq.s32.totalorder %s22, 0
    %p168 = por %p166, %p167
    %p169 = scmp.ne.s32.totalorder %s155, %s156
    %p170 = scmp.eq.s32.totalorder %s23, 1
    %p171 = por %p169, %p170
    %p173 = scmp.ne.s32.totalorder %s156, %s172
    %p174 = scmp.eq.s32.totalorder %s23, 0
    %p175 = por %p173, %p174
    %s176 = ssub.s32 %s24, %s43
    %p177 = scmp.eq.s32.totalorder %s176, 0
    %s179 = sadd.s32 %s178, 1
    %s180 = scalar_select %p177, %s178, %s179
    %p183 = pneg %p177
    %p184 = scmp.eq.s32.totalorder %s17, 1
    %p185 = por %p183, %p184
    %p186 = scmp.ne.s32.totalorder %s178, %s181
    %p187 = scmp.eq.s32.totalorder %s17, 0
    %p188 = por %p186, %p187
    %p189 = scmp.ne.s32.totalorder %s178, %s181
    %p190 = scmp.eq.s32.totalorder %s22, 1
    %p191 = por %p189, %p190
    %p192 = scmp.ne.s32.totalorder %s181, %s182
    %p193 = scmp.eq.s32.totalorder %s22, 0
    %p194 = por %p192, %p193
    %p195 = scmp.ne.s32.totalorder %s181, %s182
    %p196 = scmp.eq.s32.totalorder %s23, 1
    %p197 = por %p195, %p196
    %p199 = scmp.ne.s32.totalorder %s182, %s198
    %p200 = scmp.eq.s32.totalorder %s23, 0
    %p201 = por %p199, %p200
    %s202 = ssub.s32 %s24, %s43
    %p203 = scmp.eq.s32.totalorder %s202, 0
    %s205 = sadd.s32 %s204, 1
    %s206 = scalar_select %p203, %s204, %s205
    %p209 = pneg %p203
    %p210 = scmp.eq.s32.totalorder %s17, 1
    %p211 = por %p209, %p210
    %p212 = scmp.ne.s32.totalorder %s204, %s207
    %p213 = scmp.eq.s32.totalorder %s17, 0
    %p214 = por %p212, %p213
    %p215 = scmp.ne.s32.totalorder %s204, %s207
    %p216 = scmp.eq.s32.totalorder %s22, 1
    %p217 = por %p215, %p216
    %p218 = scmp.ne.s32.totalorder %s207, %s208
    %p219 = scmp.eq.s32.totalorder %s22, 0
    %p220 = por %p218, %p219
    %p221 = scmp.ne.s32.totalorder %s207, %s208
    %p222 = scmp.eq.s32.totalorder %s23, 1
    %p223 = por %p221, %p222
    %p225 = scmp.ne.s32.totalorder %s208, %s224
    %p226 = scmp.eq.s32.totalorder %s23, 0
    %p227 = por %p225, %p226
    %s229 = sadd.s32 %s228, 1
    %p232 = scmp.eq.s32.totalorder %s17, 1
    %p233 = scmp.ne.s32.totalorder %s228, %s230
    %p234 = scmp.eq.s32.totalorder %s17, 0
    %p235 = por %p233, %p234
    %p236 = scmp.ne.s32.totalorder %s228, %s230
    %p237 = scmp.eq.s32.totalorder %s22, 1
    %p238 = por %p236, %p237
    %p239 = scmp.ne.s32.totalorder %s230, %s231
    %p240 = scmp.eq.s32.totalorder %s22, 0
    %p241 = por %p239, %p240
    %p242 = scmp.ne.s32.totalorder %s230, %s231
    %p243 = scmp.eq.s32.totalorder %s23, 1
    %p244 = por %p242, %p243
    %p246 = scmp.ne.s32.totalorder %s231, %s245
    %p247 = scmp.eq.s32.totalorder %s23, 0
    %p248 = por %p246, %p247
    %s250 = sadd.s32 %s249, 1
    %p253 = scmp.eq.s32.totalorder %s17, 1
    %p254 = scmp.ne.s32.totalorder %s249, %s251
    %p255 = scmp.eq.s32.totalorder %s17, 0
    %p256 = por %p254, %p255
    %p257 = scmp.ne.s32.totalorder %s249, %s251
    %p258 = scmp.eq.s32.totalorder %s22, 1
    %p259 = por %p257, %p258
    %p260 = scmp.ne.s32.totalorder %s251, %s252
    %p261 = scmp.eq.s32.totalorder %s22, 0
    %p262 = por %p260, %p261
    %p263 = scmp.ne.s32.totalorder %s251, %s252
    %p264 = scmp.eq.s32.totalorder %s23, 1
    %p265 = por %p263, %p264
    %p267 = scmp.ne.s32.totalorder %s252, %s266
    %p268 = scmp.eq.s32.totalorder %s23, 0
    %p269 = por %p267, %p268
    %s271 = sadd.s32 %s270, 1
    %p274 = scmp.eq.s32.totalorder %s17, 1
    %p275 = scmp.ne.s32.totalorder %s270, %s272
    %p276 = scmp.eq.s32.totalorder %s17, 0
    %p277 = por %p275, %p276
    %p278 = scmp.ne.s32.totalorder %s270, %s272
    %p279 = scmp.eq.s32.totalorder %s22, 1
    %p280 = por %p278, %p279
    %p281 = scmp.ne.s32.totalorder %s272, %s273
    %p282 = scmp.eq.s32.totalorder %s22, 0
    %p283 = por %p281, %p282
    %p284 = scmp.ne.s32.totalorder %s272, %s273
    %p285 = scmp.eq.s32.totalorder %s23, 1
    %p286 = por %p284, %p285
    %p288 = scmp.ne.s32.totalorder %s273, %s287
    %p289 = scmp.eq.s32.totalorder %s23, 0
    %p290 = por %p288, %p289
    %s292 = sadd.s32 %s291, 1
    %p295 = scmp.eq.s32.totalorder %s17, 1
    %p296 = scmp.ne.s32.totalorder %s291, %s293
    %p297 = scmp.eq.s32.totalorder %s17, 0
    %p298 = por %p296, %p297
    %p299 = scmp.ne.s32.totalorder %s291, %s293
    %p300 = scmp.eq.s32.totalorder %s22, 1
    %p301 = por %p299, %p300
    %p302 = scmp.ne.s32.totalorder %s293, %s294
    %p303 = scmp.eq.s32.totalorder %s22, 0
    %p304 = por %p302, %p303
    %p305 = scmp.ne.s32.totalorder %s293, %s294
    %p306 = scmp.eq.s32.totalorder %s23, 1
    %p307 = por %p305, %p306
    %p309 = scmp.ne.s32.totalorder %s294, %s308
    %p310 = scmp.eq.s32.totalorder %s23, 0
    %p311 = por %p309, %p310
    %s313 = sadd.s32 %s312, 1
    %p316 = scmp.eq.s32.totalorder %s17, 1
    %p317 = scmp.ne.s32.totalorder %s312, %s314
    %p318 = scmp.eq.s32.totalorder %s17, 0
    %p319 = por %p317, %p318
    %p320 = scmp.ne.s32.totalorder %s312, %s314
    %p321 = scmp.eq.s32.totalorder %s22, 1
    %p322 = por %p320, %p321
    %p323 = scmp.ne.s32.totalorder %s314, %s315
    %p324 = scmp.eq.s32.totalorder %s22, 0
    %p325 = por %p323, %p324
    %p326 = scmp.ne.s32.totalorder %s314, %s315
    %p327 = scmp.eq.s32.totalorder %s23, 1
    %p328 = por %p326, %p327
    %p330 = scmp.ne.s32.totalorder %s315, %s329
    %p331 = scmp.eq.s32.totalorder %s23, 0
    %p332 = por %p330, %p331
    %p333 = scmp.le.s32.totalorder 1, %s17
    %p334 = scmp.lt.s32.totalorder %s17, 3
    %p335 = pnand %p333, %p334
    %p336 = pneg %p335
    // Predicated region
    $region9: #{net_forward.1} parent=5 // pred_check
      _
    $region10: #{net_forward.1} parent=5 // pred_check_branch
      %338 = sbr.rel (%p335) target = $region12
    $region11: #{net_forward.1} parent=5 // pred_region
      %s339 = ssub.s32 %s17, 1
      // Predicated region
      $region13: #{net_forward.1} parent=11 // pred_check
        %p340 = pneg %p64
      $region14: #{net_forward.1} parent=11 // pred_check_branch
        %342 = sbr.rel (%p340) target = $region16
      $region15: #{net_forward.1} parent=11 // pred_region
        %s343 = smul.u32 16, %s28
        %p344 = scmp.lt.s32.totalorder %s343, 15
        %s345 = scalar_select %p344, %s343, 15
        %p346 = scmp.lt.s32.totalorder %s29, 0
        %s347 = scalar_select %p346, %s29, 0
        %s348 = sadd.s32 %s347, %s345
        %s349 = smul.addr %s348, 4
        %s350 = scalar_lea.vmem %s0, %s349
        %s351 = smul.u32 16, %s28
      $region16: #{net_forward.1} parent=11 // pred_fallthru
        _
      // Predicated region
      $region17: #{net_forward.1} parent=11 // pred_check
        %p352 = pneg %p90
      $region18: #{net_forward.1} parent=11 // pred_check_branch
        %354 = sbr.rel (%p352) target = $region20
      $region19: #{net_forward.1} parent=11 // pred_region
        %s355 = smul.u32 16, %s29
        %p356 = scmp.lt.s32.totalorder %s355, 15
        %s357 = scalar_select %p356, %s355, 15
        %s358 = smul.addr %s357, 4
        %s359 = scalar_lea.vmem %s1, %s358
        %s360 = smul.u32 16, %s29
      $region20: #{net_forward.1} parent=11 // pred_fallthru
        _
      // Predicated region
      $region21: #{net_forward.1} parent=11 // pred_check
        %p361 = pneg %p116
      $region22: #{net_forward.1} parent=11 // pred_check_branch
        %363 = sbr.rel (%p361) target = $region24
      $region23: #{net_forward.1} parent=11 // pred_region
        %p364 = scmp.lt.s32.totalorder %s28, 0
        %s365 = scalar_select %p364, %s28, 0
        %s366 = smul.addr %s365, 4
        %s367 = scalar_lea.vmem %s2, %s366
      $region24: #{net_forward.1} parent=11 // pred_fallthru
        _
      // Predicated region
      $region25: #{net_forward.1} parent=11 // pred_check
        %p368 = pneg %p241
      $region26: #{net_forward.1} parent=11 // pred_check_branch
        %370 = sbr.rel (%p368) target = $region28
      $region27: #{net_forward.1} parent=11 // pred_region
        _
      $region28: #{net_forward.1} parent=11 // pred_fallthru
        _
      // Predicated region
      $region29: #{net_forward.1} parent=11 // pred_check
        %p371 = pneg %p262
      $region30: #{net_forward.1} parent=11 // pred_check_branch
        %373 = sbr.rel (%p371) target = $region32
      $region31: #{net_forward.1} parent=11 // pred_region
        _
      $region32: #{net_forward.1} parent=11 // pred_fallthru
        _
      // Predicated region
      $region33: #{net_forward.1} parent=11 // pred_check
        %p374 = pneg %p283
      $region34: #{net_forward.1} parent=11 // pred_check_branch
        %376 = sbr.rel (%p374) target = $region36
      $region35: #{net_forward.1} parent=11 // pred_region
        _
      $region36: #{net_forward.1} parent=11 // pred_fallthru
        _
      // Predicated region
      $region37: #{net_forward.1} parent=11 // pred_check
        %p377 = pneg %p304
      $region38: #{net_forward.1} parent=11 // pred_check_branch
        %379 = sbr.rel (%p377) target = $region40
      $region39: #{net_forward.1} parent=11 // pred_region
        _
      $region40: #{net_forward.1} parent=11 // pred_fallthru
        _
    $region12: #{net_forward.1} parent=5 // pred_fallthru
      _
    %p380 = scmp.lt.s32.totalorder %s17, 2
    // Predicated region
    $region41: #{net_forward.1} parent=5 // pred_check
      %p381 = pneg %p380
    $region42: #{net_forward.1} parent=5 // pred_check_branch
      %383 = sbr.rel (%p381) target = $region44
    $region43: #{net_forward.1} parent=5 // pred_region
      // Predicated region
      $region45: #{net_forward.1} parent=43 // pred_check
        %p384 = pneg %p136
      $region46: #{net_forward.1} parent=43 // pred_check_branch
        %386 = sbr.rel (%p384) target = $region48
      $region47: #{net_forward.1} parent=43 // pred_region
        %p387 = scmp.lt.s32.totalorder %s24, 1
        %s388 = scalar_select %p387, %s24, 1
        %s389 = smul.addr %s388, 16
        %s390 = smul.addr %s389, 4
        %s391 = scalar_lea.vmem %s3, %s390
      $region48: #{net_forward.1} parent=43 // pred_fallthru
        _
      // Predicated region
      $region49: #{net_forward.1} parent=43 // pred_check
        %p392 = pneg %p162
      $region50: #{net_forward.1} parent=43 // pred_check_branch
        %394 = sbr.rel (%p392) target = $region52
      $region51: #{net_forward.1} parent=43 // pred_region
        %p395 = scmp.lt.s32.totalorder %s24, 1
        %s396 = scalar_select %p395, %s24, 1
        %s397 = scalar_lea.vmem %s4, %s396
      $region52: #{net_forward.1} parent=43 // pred_fallthru
        _
      // Predicated region
      $region53: #{net_forward.1} parent=43 // pred_check
        %p398 = pneg %p188
      $region54: #{net_forward.1} parent=43 // pred_check_branch
        %400 = sbr.rel (%p398) target = $region56
      $region55: #{net_forward.1} parent=43 // pred_region
        %p401 = scmp.lt.s32.totalorder %s24, 1
        %s402 = scalar_select %p401, %s24, 1
        %s403 = smul.addr %s402, 16
        %s404 = smul.addr %s403, 4
        %s405 = scalar_lea.vmem %s5, %s404
      $region56: #{net_forward.1} parent=43 // pred_fallthru
        _
      // Predicated region
      $region57: #{net_forward.1} parent=43 // pred_check
        %p406 = pneg %p214
      $region58: #{net_forward.1} parent=43 // pred_check_branch
        %408 = sbr.rel (%p406) target = $region60
      $region59: #{net_forward.1} parent=43 // pred_region
        %p409 = scmp.lt.s32.totalorder %s24, 1
        %s410 = scalar_select %p409, %s24, 1
        %s411 = scalar_lea.vmem %s6, %s410
      $region60: #{net_forward.1} parent=43 // pred_fallthru
        _
    $region44: #{net_forward.1} parent=5 // pred_fallthru
      _
    %p412 = scmp.le.s32.totalorder 1, %s17
    %p413 = scmp.lt.s32.totalorder %s17, 3
    %p414 = pnand %p412, %p413
    %p415 = pneg %p414
    // Predicated region
    $region61: #{net_forward.1} parent=5 // pred_check
      _
    $region62: #{net_forward.1} parent=5 // pred_check_branch
      %417 = sbr.rel (%p414) target = $region64
    $region63: #{net_forward.1} parent=5 // pred_region
      %s418 = ssub.s32 %s17, 1
      %s419 = smul.u32 16, %s28
      %p420 = scmp.lt.s32.totalorder %s419, 15
      %s421 = scalar_select %p420, %s419, 15
      %p422 = scmp.lt.s32.totalorder %s29, 0
      %s423 = scalar_select %p422, %s29, 0
      %s424 = sadd.s32 %s423, %s421
      %s425 = smul.addr %s424, 4
      %s426 = scalar_lea.vmem %s0, %s425
      %p427 = pneg %p64
      %p428 = pneg %p61
      %s429 = smul.u32 16, %s29
      %p430 = scmp.lt.s32.totalorder %s429, 15
      %s431 = scalar_select %p430, %s429, 15
      %s432 = smul.addr %s431, 4
      %s433 = scalar_lea.vmem %s1, %s432
      %p434 = pneg %p90
      %p435 = pneg %p87
      %p436 = scmp.lt.s32.totalorder %s28, 0
      %s437 = scalar_select %p436, %s28, 0
      %s438 = smul.addr %s437, 4
      %s439 = scalar_lea.vmem %s2, %s438
      %p440 = pneg %p116
      %p441 = pneg %p113
      %p442 = scmp.lt.s32.totalorder %s27, 1
      %s443 = scalar_select %p442, %s27, 1
      %s444 = smul.addr %s443, 16
      %s445 = smul.addr %s444, 4
      %s446 = scalar_lea.vmem %s3, %s445
      %p447 = pneg %p142
      %p448 = pneg %p139
      %p449 = scmp.lt.s32.totalorder %s27, 1
      %s450 = scalar_select %p449, %s27, 1
      %s451 = scalar_lea.vmem %s4, %s450
      %p452 = pneg %p168
      %p453 = pneg %p165
      %p454 = scmp.lt.s32.totalorder %s27, 1
      %s455 = scalar_select %p454, %s27, 1
      %s456 = smul.addr %s455, 16
      %s457 = smul.addr %s456, 4
      %s458 = scalar_lea.vmem %s5, %s457
      %p459 = pneg %p194
      %p460 = pneg %p191
      %p461 = scmp.lt.s32.totalorder %s27, 1
      %s462 = scalar_select %p461, %s27, 1
      %s463 = scalar_lea.vmem %s6, %s462
      %p464 = pneg %p220
      %p465 = pneg %p217
      %p466 = pneg %p241
      %p467 = pneg %p238
      %p468 = pneg %p262
      %p469 = pneg %p259
      %p470 = pneg %p283
      %p471 = pneg %p280
      %p472 = pneg %p304
      %p473 = pneg %p301
      %p474 = pneg %p325
      %p475 = pneg %p322
      %s476 = smul.u32 16, %s28
      %p477 = scmp.lt.s32.totalorder %s476, 15
      %s478 = scalar_select %p477, %s476, 15
      %p479 = scmp.lt.s32.totalorder %s29, 0
      %s480 = scalar_select %p479, %s29, 0
      %s481 = sadd.s32 %s480, %s478
      %s482 = smul.addr %s481, 4
      %s483 = scalar_lea.vmem %s0, %s482
      %s484 = smul.u32 16, %s28
      %s485 = smul.u32 16, %s29
      %p486 = scmp.lt.s32.totalorder %s485, 15
      %s487 = scalar_select %p486, %s485, 15
      %s488 = smul.addr %s487, 4
      %s489 = scalar_lea.vmem %s1, %s488
      %s490 = smul.u32 16, %s29
      %p491 = scmp.lt.s32.totalorder %s28, 0
      %s492 = scalar_select %p491, %s28, 0
      %s493 = smul.addr %s492, 4
      %s494 = scalar_lea.vmem %s2, %s493
      %p495 = scmp.lt.s32.totalorder %s27, 1
      %s496 = scalar_select %p495, %s27, 1
      %s497 = smul.addr %s496, 16
      %s498 = smul.addr %s497, 4
      %s499 = scalar_lea.vmem %s3, %s498
      %p500 = scmp.lt.s32.totalorder %s27, 1
      %s501 = scalar_select %p500, %s27, 1
      %s502 = scalar_lea.vmem %s4, %s501
      %p503 = scmp.lt.s32.totalorder %s27, 1
      %s504 = scalar_select %p503, %s27, 1
      %s505 = smul.addr %s504, 16
      %s506 = smul.addr %s505, 4
      %s507 = scalar_lea.vmem %s5, %s506
      %p508 = scmp.lt.s32.totalorder %s27, 1
      %s509 = scalar_select %p508, %s27, 1
      %s510 = scalar_lea.vmem %s6, %s509
      %s511 = smul.u32 %s28, 128
      %s512 = smul.u32 %s29, 128
      %p513 = scmp.eq.s32.totalorder %s27, 0
      %p514 = scmp.eq.s32.totalorder %s28, 0
      %p515 = pnand %p513, %p514
      %p516 = pneg %p515
      %p517 = scmp.eq.s32.totalorder %s29, 0
      %p518 = pnand %p516, %p517
      %p519 = pneg %p518
      // Predicated region
      $region65: #{net_forward.1} parent=63 // pred_check
        _
      $region66: #{net_forward.1} parent=63 // pred_check_branch
        %521 = sbr.rel (%p518) target = $region68
      $region67: #{net_forward.1} parent=63 // pred_region
        %522 = vst [vmem:[#allocation4] sm:$0xff] 0.0
      $region68: #{net_forward.1} parent=63 // pred_fallthru
        _
      // Predicated region
      $region69: #{net_forward.1} parent=63 // pred_check
        %p523 = pneg %p517
      $region70: #{net_forward.1} parent=63 // pred_check_branch
        %525 = sbr.rel (%p523) target = $region72
      $region71: #{net_forward.1} parent=63 // pred_region
        %526 = vst [vmem:[#allocation3] sm:$0xff] 0.0
        %527 = vst [vmem:[#allocation3 + $0x8] sm:$0xff] 0.0
        %528 = vst [vmem:[#allocation3 + $0x10] sm:$0xff] 0.0
        %529 = vst [vmem:[#allocation3 + $0x18] sm:$0xff] 0.0
        %530 = vst [vmem:[#allocation3 + $0x20] sm:$0xff] 0.0
        %531 = vst [vmem:[#allocation3 + $0x28] sm:$0xff] 0.0
        %532 = vst [vmem:[#allocation3 + $0x30] sm:$0xff] 0.0
        %533 = vst [vmem:[#allocation3 + $0x38] sm:$0xff] 0.0
        %534 = vst [vmem:[#allocation3 + $0x40] sm:$0xff] 0.0
        %535 = vst [vmem:[#allocation3 + $0x48] sm:$0xff] 0.0
        %536 = vst [vmem:[#allocation3 + $0x50] sm:$0xff] 0.0
        %537 = vst [vmem:[#allocation3 + $0x58] sm:$0xff] 0.0
        %538 = vst [vmem:[#allocation3 + $0x60] sm:$0xff] 0.0
        %539 = vst [vmem:[#allocation3 + $0x68] sm:$0xff] 0.0
        %540 = vst [vmem:[#allocation3 + $0x70] sm:$0xff] 0.0
        %541 = vst [vmem:[#allocation3 + $0x78] sm:$0xff] 0.0
      $region72: #{net_forward.1} parent=63 // pred_fallthru
        _
      // Predicated region
      $region73: #{net_forward.1} parent=63 // pred_check
        %p542 = pneg %p513
      $region74: #{net_forward.1} parent=63 // pred_check_branch
        %544 = sbr.rel (%p542) target = $region76
      $region75: #{net_forward.1} parent=63 // pred_region
        %v545 = vld [vmem:[#allocation3] sm:$0xff]
        %v546 = vld [vmem:[#allocation3 + $0x8] sm:$0xff]
        %v547 = vld [vmem:[#allocation3 + $0x10] sm:$0xff]
        %v548 = vld [vmem:[#allocation3 + $0x18] sm:$0xff]
        %v549 = vld [vmem:[#allocation3 + $0x20] sm:$0xff]
        %v550 = vld [vmem:[#allocation3 + $0x28] sm:$0xff]
        %v551 = vld [vmem:[#allocation3 + $0x30] sm:$0xff]
        %v552 = vld [vmem:[#allocation3 + $0x38] sm:$0xff]
        %v553 = vld [vmem:[#allocation3 + $0x40] sm:$0xff]
        %v554 = vld [vmem:[#allocation3 + $0x48] sm:$0xff]
        %v555 = vld [vmem:[#allocation3 + $0x50] sm:$0xff]
        %v556 = vld [vmem:[#allocation3 + $0x58] sm:$0xff]
        %v557 = vld [vmem:[#allocation3 + $0x60] sm:$0xff]
        %v558 = vld [vmem:[#allocation3 + $0x68] sm:$0xff]
        %v559 = vld [vmem:[#allocation3 + $0x70] sm:$0xff]
        %v560 = vld [vmem:[#allocation3 + $0x78] sm:$0xff]
        %v561 = vld [vmem:[%s483] sm:$0xf]
        %v562 = vld [vmem:[%s483 + $0x4] sm:$0xf]
        %v563 = vld [vmem:[%s483 + $0x8] sm:$0xf]
        %v564 = vld [vmem:[%s483 + $0xc] sm:$0xf]
        %v565 = vld [vmem:[%s483 + $0x10] sm:$0xf]
        %v566 = vld [vmem:[%s483 + $0x14] sm:$0xf]
        %v567 = vld [vmem:[%s483 + $0x18] sm:$0xf]
        %v568 = vld [vmem:[%s483 + $0x1c] sm:$0xf]
        %v569 = vld [vmem:[%s483 + $0x20] sm:$0xf]
        %v570 = vld [vmem:[%s483 + $0x24] sm:$0xf]
        %v571 = vld [vmem:[%s483 + $0x28] sm:$0xf]
        %v572 = vld [vmem:[%s483 + $0x2c] sm:$0xf]
        %v573 = vld [vmem:[%s483 + $0x30] sm:$0xf]
        %v574 = vld [vmem:[%s483 + $0x34] sm:$0xf]
        %v575 = vld [vmem:[%s483 + $0x38] sm:$0xf]
        %v576 = vld [vmem:[%s483 + $0x3c] sm:$0xf]
        %v577 = vld [vmem:[%s489] sm:$0xf]
        %v578 = vld [vmem:[%s489 + $0x4] sm:$0xf]
        %v579 = vld [vmem:[%s489 + $0x8] sm:$0xf]
        %v580 = vld [vmem:[%s489 + $0xc] sm:$0xf]
        %v581 = vld [vmem:[%s489 + $0x10] sm:$0xf]
        %v582 = vld [vmem:[%s489 + $0x14] sm:$0xf]
        %v583 = vld [vmem:[%s489 + $0x18] sm:$0xf]
        %v584 = vld [vmem:[%s489 + $0x1c] sm:$0xf]
        %v585 = vld [vmem:[%s489 + $0x20] sm:$0xf]
        %v586 = vld [vmem:[%s489 + $0x24] sm:$0xf]
        %v587 = vld [vmem:[%s489 + $0x28] sm:$0xf]
        %v588 = vld [vmem:[%s489 + $0x2c] sm:$0xf]
        %v589 = vld [vmem:[%s489 + $0x30] sm:$0xf]
        %v590 = vld [vmem:[%s489 + $0x34] sm:$0xf]
        %v591 = vld [vmem:[%s489 + $0x38] sm:$0xf]
        %v592 = vld [vmem:[%s489 + $0x3c] sm:$0xf]
        %v609 = vunpack.c.l.b16 %v561
        %v610 = vunpack.c.l.b16 %v562
        %v611 = vunpack.c.l.b16 %v563
        %v612 = vunpack.c.l.b16 %v564
        %v613 = vunpack.c.l.b16 %v565
        %v614 = vunpack.c.l.b16 %v566
        %v615 = vunpack.c.l.b16 %v567
        %v616 = vunpack.c.l.b16 %v568
        %v617 = vunpack.c.l.b16 %v569
        %v618 = vunpack.c.l.b16 %v570
        %v619 = vunpack.c.l.b16 %v571
        %v620 = vunpack.c.l.b16 %v572
        %v621 = vunpack.c.l.b16 %v573
        %v622 = vunpack.c.l.b16 %v574
        %v623 = vunpack.c.l.b16 %v575
        %v624 = vunpack.c.l.b16 %v576
        %v625 = vpack.c.b16 %v610, %v609
        %v626 = vpack.c.b16 %v612, %v611
        %v627 = vpack.c.b16 %v614, %v613
        %v628 = vpack.c.b16 %v616, %v615
        %v629 = vpack.c.b16 %v618, %v617
        %v630 = vpack.c.b16 %v620, %v619
        %v631 = vpack.c.b16 %v622, %v621
        %v632 = vpack.c.b16 %v624, %v623
        %v657 = vunpack.c.l.b16 %v577
        %v658 = vunpack.c.l.b16 %v578
        %v659 = vunpack.c.l.b16 %v579
        %v660 = vunpack.c.l.b16 %v580
        %v661 = vunpack.c.l.b16 %v581
        %v662 = vunpack.c.l.b16 %v582
        %v663 = vunpack.c.l.b16 %v583
        %v664 = vunpack.c.l.b16 %v584
        %v665 = vunpack.c.l.b16 %v585
        %v666 = vunpack.c.l.b16 %v586
        %v667 = vunpack.c.l.b16 %v587
        %v668 = vunpack.c.l.b16 %v588
        %v669 = vunpack.c.l.b16 %v589
        %v670 = vunpack.c.l.b16 %v590
        %v671 = vunpack.c.l.b16 %v591
        %v672 = vunpack.c.l.b16 %v592
        %v673 = vpack.c.b16 %v658, %v657
        %v674 = vpack.c.b16 %v660, %v659
        %v675 = vpack.c.b16 %v662, %v661
        %v676 = vpack.c.b16 %v664, %v663
        %v677 = vpack.c.b16 %v666, %v665
        %v678 = vpack.c.b16 %v668, %v667
        %v679 = vpack.c.b16 %v670, %v669
        %v680 = vpack.c.b16 %v672, %v671
        %689 = vmatpush.bf16.msra.mxu0 %v680
        %690 = vmatpush.bf16.msra.mxu0 %v679
        %691 = vmatpush.bf16.msra.mxu0 %v678
        %692 = vmatpush.bf16.msra.mxu0 %v677
        %693 = vmatpush.bf16.msra.mxu0 %v676
        %694 = vmatpush.bf16.msra.mxu0 %v675
        %695 = vmatpush.bf16.msra.mxu0 %v674
        %696 = vmatpush.bf16.msra.mxu0 %v673
        %697 = vmatmul.bf16.gmra.mxu0 %v625
        %v698 = vpop.f32.mrf.mxu0
        %v699 = vadd.f32 0.0, %v698
        %v700 = vpop.f32.mrf.mxu0
        %v701 = vadd.f32 0.0, %v700
        %702 = vmatmul.bf16.gmra.mxu0 %v626
        %v703 = vpop.f32.mrf.mxu0
        %v704 = vadd.f32 0.0, %v703
        %v705 = vpop.f32.mrf.mxu0
        %v706 = vadd.f32 0.0, %v705
        %707 = vmatmul.bf16.gmra.mxu0 %v627
        %v708 = vpop.f32.mrf.mxu0
        %v709 = vadd.f32 0.0, %v708
        %v710 = vpop.f32.mrf.mxu0
        %v711 = vadd.f32 0.0, %v710
        %712 = vmatmul.bf16.gmra.mxu0 %v628
        %v713 = vpop.f32.mrf.mxu0
        %v714 = vadd.f32 0.0, %v713
        %v715 = vpop.f32.mrf.mxu0
        %v716 = vadd.f32 0.0, %v715
        %717 = vmatmul.bf16.gmra.mxu0 %v629
        %v718 = vpop.f32.mrf.mxu0
        %v719 = vadd.f32 0.0, %v718
        %v720 = vpop.f32.mrf.mxu0
        %v721 = vadd.f32 0.0, %v720
        %722 = vmatmul.bf16.gmra.mxu0 %v630
        %v723 = vpop.f32.mrf.mxu0
        %v724 = vadd.f32 0.0, %v723
        %v725 = vpop.f32.mrf.mxu0
        %v726 = vadd.f32 0.0, %v725
        %727 = vmatmul.bf16.gmra.mxu0 %v631
        %v728 = vpop.f32.mrf.mxu0
        %v729 = vadd.f32 0.0, %v728
        %v730 = vpop.f32.mrf.mxu0
        %v731 = vadd.f32 0.0, %v730
        %732 = vmatmul.bf16.gmra.mxu0 %v632
        %v733 = vpop.f32.mrf.mxu0
        %v734 = vadd.f32 0.0, %v733
        %v735 = vpop.f32.mrf.mxu0
        %v736 = vadd.f32 0.0, %v735
        %737 = vdwg.mxu0
        %v738 = vadd.f32 %v545, %v699
        %v739 = vadd.f32 %v546, %v701
        %v740 = vadd.f32 %v547, %v704
        %v741 = vadd.f32 %v548, %v706
        %v742 = vadd.f32 %v549, %v709
        %v743 = vadd.f32 %v550, %v711
        %v744 = vadd.f32 %v551, %v714
        %v745 = vadd.f32 %v552, %v716
        %v746 = vadd.f32 %v553, %v719
        %v747 = vadd.f32 %v554, %v721
        %v748 = vadd.f32 %v555, %v724
        %v749 = vadd.f32 %v556, %v726
        %v750 = vadd.f32 %v557, %v729
        %v751 = vadd.f32 %v558, %v731
        %v752 = vadd.f32 %v559, %v734
        %v753 = vadd.f32 %v560, %v736
        %754 = vst [vmem:[#allocation3] sm:$0xff] %v738
        %755 = vst [vmem:[#allocation3 + $0x8] sm:$0xff] %v739
        %756 = vst [vmem:[#allocation3 + $0x10] sm:$0xff] %v740
        %757 = vst [vmem:[#allocation3 + $0x18] sm:$0xff] %v741
        %758 = vst [vmem:[#allocation3 + $0x20] sm:$0xff] %v742
        %759 = vst [vmem:[#allocation3 + $0x28] sm:$0xff] %v743
        %760 = vst [vmem:[#allocation3 + $0x30] sm:$0xff] %v744
        %761 = vst [vmem:[#allocation3 + $0x38] sm:$0xff] %v745
        %762 = vst [vmem:[#allocation3 + $0x40] sm:$0xff] %v746
        %763 = vst [vmem:[#allocation3 + $0x48] sm:$0xff] %v747
        %764 = vst [vmem:[#allocation3 + $0x50] sm:$0xff] %v748
        %765 = vst [vmem:[#allocation3 + $0x58] sm:$0xff] %v749
        %766 = vst [vmem:[#allocation3 + $0x60] sm:$0xff] %v750
        %767 = vst [vmem:[#allocation3 + $0x68] sm:$0xff] %v751
        %768 = vst [vmem:[#allocation3 + $0x70] sm:$0xff] %v752
        %769 = vst [vmem:[#allocation3 + $0x78] sm:$0xff] %v753
      $region76: #{net_forward.1} parent=63 // pred_fallthru
        _
      %p770 = scmp.gt.s32.totalorder %s27, 0
      // Predicated region
      $region77: #{net_forward.1} parent=63 // pred_check
        %p771 = pneg %p770
      $region78: #{net_forward.1} parent=63 // pred_check_branch
        %773 = sbr.rel (%p771) target = $region80
      $region79: #{net_forward.1} parent=63 // pred_region
        %s774 = sadd.s32 %s27, 1
        %p775 = scmp.lt.s32.totalorder %s774, 0
        %s776 = ssub.s32 0, %s774
        %s777 = scalar_select %p775, %s776, %s774
        %s778 = sand.u32 %s777, 1
        %s779 = ssub.s32 0, %s778
        %s780 = scalar_select %p775, %s779, %s778
        %p781 = scmp.ne.s32.totalorder %s780, 0
        %p782 = scmp.lt.s32.totalorder %s780, 0
        %p783 = pnand %p782, %p781
        %p784 = pneg %p783
        %s785 = sadd.s32 %s780, 2
        %s786 = scalar_select %p784, %s785, %s780
        %s787 = sshra.s32 %s512, 3
        %s788 = sand.u32 %s512, 7
        %s789 = smul.u32 %s786, 16
        %s790 = sadd.s32 %s787, %s789
        %s791 = smul.addr %s790, 4
        %s792 = scalar_lea.vmem [#allocation2], %s791
        %v793 = vld [vmem:[%s792] sm:$0xf]
        %v794 = vld [vmem:[%s792 + $0x4] sm:$0xf]
        %v795 = vld [vmem:[%s792 + $0x8] sm:$0xf]
        %v796 = vld [vmem:[%s792 + $0xc] sm:$0xf]
        %v797 = vld [vmem:[%s792 + $0x10] sm:$0xf]
        %v798 = vld [vmem:[%s792 + $0x14] sm:$0xf]
        %v799 = vld [vmem:[%s792 + $0x18] sm:$0xf]
        %v800 = vld [vmem:[%s792 + $0x1c] sm:$0xf]
        %v801 = vld [vmem:[%s792 + $0x20] sm:$0xf]
        %v802 = vld [vmem:[%s792 + $0x24] sm:$0xf]
        %v803 = vld [vmem:[%s792 + $0x28] sm:$0xf]
        %v804 = vld [vmem:[%s792 + $0x2c] sm:$0xf]
        %v805 = vld [vmem:[%s792 + $0x30] sm:$0xf]
        %v806 = vld [vmem:[%s792 + $0x34] sm:$0xf]
        %v807 = vld [vmem:[%s792 + $0x38] sm:$0xf]
        %v808 = vld [vmem:[%s792 + $0x3c] sm:$0xf]
        %v809 = vld [vmem:[#allocation3] sm:$0xff]
        %v810 = vld [vmem:[#allocation3 + $0x8] sm:$0xff]
        %v811 = vld [vmem:[#allocation3 + $0x10] sm:$0xff]
        %v812 = vld [vmem:[#allocation3 + $0x18] sm:$0xff]
        %v813 = vld [vmem:[#allocation3 + $0x20] sm:$0xff]
        %v814 = vld [vmem:[#allocation3 + $0x28] sm:$0xff]
        %v815 = vld [vmem:[#allocation3 + $0x30] sm:$0xff]
        %v816 = vld [vmem:[#allocation3 + $0x38] sm:$0xff]
        %v817 = vld [vmem:[#allocation3 + $0x40] sm:$0xff]
        %v818 = vld [vmem:[#allocation3 + $0x48] sm:$0xff]
        %v819 = vld [vmem:[#allocation3 + $0x50] sm:$0xff]
        %v820 = vld [vmem:[#allocation3 + $0x58] sm:$0xff]
        %v821 = vld [vmem:[#allocation3 + $0x60] sm:$0xff]
        %v822 = vld [vmem:[#allocation3 + $0x68] sm:$0xff]
        %v823 = vld [vmem:[#allocation3 + $0x70] sm:$0xff]
        %v824 = vld [vmem:[#allocation3 + $0x78] sm:$0xff]
        %v825 = vld [vmem:[%s483] sm:$0xf]
        %v826 = vld [vmem:[%s483 + $0x4] sm:$0xf]
        %v827 = vld [vmem:[%s483 + $0x8] sm:$0xf]
        %v828 = vld [vmem:[%s483 + $0xc] sm:$0xf]
        %v829 = vld [vmem:[%s483 + $0x10] sm:$0xf]
        %v830 = vld [vmem:[%s483 + $0x14] sm:$0xf]
        %v831 = vld [vmem:[%s483 + $0x18] sm:$0xf]
        %v832 = vld [vmem:[%s483 + $0x1c] sm:$0xf]
        %v833 = vld [vmem:[%s483 + $0x20] sm:$0xf]
        %v834 = vld [vmem:[%s483 + $0x24] sm:$0xf]
        %v835 = vld [vmem:[%s483 + $0x28] sm:$0xf]
        %v836 = vld [vmem:[%s483 + $0x2c] sm:$0xf]
        %v837 = vld [vmem:[%s483 + $0x30] sm:$0xf]
        %v838 = vld [vmem:[%s483 + $0x34] sm:$0xf]
        %v839 = vld [vmem:[%s483 + $0x38] sm:$0xf]
        %v840 = vld [vmem:[%s483 + $0x3c] sm:$0xf]
        %v857 = vunpack.c.l.b16 %v825
        %v858 = vunpack.c.l.b16 %v826
        %v859 = vunpack.c.l.b16 %v827
        %v860 = vunpack.c.l.b16 %v828
        %v861 = vunpack.c.l.b16 %v829
        %v862 = vunpack.c.l.b16 %v830
        %v863 = vunpack.c.l.b16 %v831
        %v864 = vunpack.c.l.b16 %v832
        %v865 = vunpack.c.l.b16 %v833
        %v866 = vunpack.c.l.b16 %v834
        %v867 = vunpack.c.l.b16 %v835
        %v868 = vunpack.c.l.b16 %v836
        %v869 = vunpack.c.l.b16 %v837
        %v870 = vunpack.c.l.b16 %v838
        %v871 = vunpack.c.l.b16 %v839
        %v872 = vunpack.c.l.b16 %v840
        %v873 = vpack.c.b16 %v858, %v857
        %v874 = vpack.c.b16 %v860, %v859
        %v875 = vpack.c.b16 %v862, %v861
        %v876 = vpack.c.b16 %v864, %v863
        %v877 = vpack.c.b16 %v866, %v865
        %v878 = vpack.c.b16 %v868, %v867
        %v879 = vpack.c.b16 %v870, %v869
        %v880 = vpack.c.b16 %v872, %v871
        %v905 = vunpack.c.l.b16 %v793
        %v906 = vunpack.c.l.b16 %v794
        %v907 = vunpack.c.l.b16 %v795
        %v908 = vunpack.c.l.b16 %v796
        %v909 = vunpack.c.l.b16 %v797
        %v910 = vunpack.c.l.b16 %v798
        %v911 = vunpack.c.l.b16 %v799
        %v912 = vunpack.c.l.b16 %v800
        %v913 = vunpack.c.l.b16 %v801
        %v914 = vunpack.c.l.b16 %v802
        %v915 = vunpack.c.l.b16 %v803
        %v916 = vunpack.c.l.b16 %v804
        %v917 = vunpack.c.l.b16 %v805
        %v918 = vunpack.c.l.b16 %v806
        %v919 = vunpack.c.l.b16 %v807
        %v920 = vunpack.c.l.b16 %v808
        %v921 = vpack.c.b16 %v906, %v905
        %v922 = vpack.c.b16 %v908, %v907
        %v923 = vpack.c.b16 %v910, %v909
        %v924 = vpack.c.b16 %v912, %v911
        %v925 = vpack.c.b16 %v914, %v913
        %v926 = vpack.c.b16 %v916, %v915
        %v927 = vpack.c.b16 %v918, %v917
        %v928 = vpack.c.b16 %v920, %v919
        %937 = vmatpush.bf16.msra.mxu0 %v928
        %938 = vmatpush.bf16.msra.mxu0 %v927
        %939 = vmatpush.bf16.msra.mxu0 %v926
        %940 = vmatpush.bf16.msra.mxu0 %v925
        %941 = vmatpush.bf16.msra.mxu0 %v924
        %942 = vmatpush.bf16.msra.mxu0 %v923
        %943 = vmatpush.bf16.msra.mxu0 %v922
        %944 = vmatpush.bf16.msra.mxu0 %v921
        %945 = vmatmul.bf16.gmra.mxu0 %v873
        %v946 = vpop.f32.mrf.mxu0
        %v947 = vadd.f32 0.0, %v946
        %v948 = vpop.f32.mrf.mxu0
        %v949 = vadd.f32 0.0, %v948
        %950 = vmatmul.bf16.gmra.mxu0 %v874
        %v951 = vpop.f32.mrf.mxu0
        %v952 = vadd.f32 0.0, %v951
        %v953 = vpop.f32.mrf.mxu0
        %v954 = vadd.f32 0.0, %v953
        %955 = vmatmul.bf16.gmra.mxu0 %v875
        %v956 = vpop.f32.mrf.mxu0
        %v957 = vadd.f32 0.0, %v956
        %v958 = vpop.f32.mrf.mxu0
        %v959 = vadd.f32 0.0, %v958
        %960 = vmatmul.bf16.gmra.mxu0 %v876
        %v961 = vpop.f32.mrf.mxu0
        %v962 = vadd.f32 0.0, %v961
        %v963 = vpop.f32.mrf.mxu0
        %v964 = vadd.f32 0.0, %v963
        %965 = vmatmul.bf16.gmra.mxu0 %v877
        %v966 = vpop.f32.mrf.mxu0
        %v967 = vadd.f32 0.0, %v966
        %v968 = vpop.f32.mrf.mxu0
        %v969 = vadd.f32 0.0, %v968
        %970 = vmatmul.bf16.gmra.mxu0 %v878
        %v971 = vpop.f32.mrf.mxu0
        %v972 = vadd.f32 0.0, %v971
        %v973 = vpop.f32.mrf.mxu0
        %v974 = vadd.f32 0.0, %v973
        %975 = vmatmul.bf16.gmra.mxu0 %v879
        %v976 = vpop.f32.mrf.mxu0
        %v977 = vadd.f32 0.0, %v976
        %v978 = vpop.f32.mrf.mxu0
        %v979 = vadd.f32 0.0, %v978
        %980 = vmatmul.bf16.gmra.mxu0 %v880
        %v981 = vpop.f32.mrf.mxu0
        %v982 = vadd.f32 0.0, %v981
        %v983 = vpop.f32.mrf.mxu0
        %v984 = vadd.f32 0.0, %v983
        %985 = vdwg.mxu0
        %v986 = vadd.f32 %v809, %v947
        %v987 = vadd.f32 %v810, %v949
        %v988 = vadd.f32 %v811, %v952
        %v989 = vadd.f32 %v812, %v954
        %v990 = vadd.f32 %v813, %v957
        %v991 = vadd.f32 %v814, %v959
        %v992 = vadd.f32 %v815, %v962
        %v993 = vadd.f32 %v816, %v964
        %v994 = vadd.f32 %v817, %v967
        %v995 = vadd.f32 %v818, %v969
        %v996 = vadd.f32 %v819, %v972
        %v997 = vadd.f32 %v820, %v974
        %v998 = vadd.f32 %v821, %v977
        %v999 = vadd.f32 %v822, %v979
        %v1000 = vadd.f32 %v823, %v982
        %v1001 = vadd.f32 %v824, %v984
        %1002 = vst [vmem:[#allocation3] sm:$0xff] %v986
        %1003 = vst [vmem:[#allocation3 + $0x8] sm:$0xff] %v987
        %1004 = vst [vmem:[#allocation3 + $0x10] sm:$0xff] %v988
        %1005 = vst [vmem:[#allocation3 + $0x18] sm:$0xff] %v989
        %1006 = vst [vmem:[#allocation3 + $0x20] sm:$0xff] %v990
        %1007 = vst [vmem:[#allocation3 + $0x28] sm:$0xff] %v991
        %1008 = vst [vmem:[#allocation3 + $0x30] sm:$0xff] %v992
        %1009 = vst [vmem:[#allocation3 + $0x38] sm:$0xff] %v993
        %1010 = vst [vmem:[#allocation3 + $0x40] sm:$0xff] %v994
        %1011 = vst [vmem:[#allocation3 + $0x48] sm:$0xff] %v995
        %1012 = vst [vmem:[#allocation3 + $0x50] sm:$0xff] %v996
        %1013 = vst [vmem:[#allocation3 + $0x58] sm:$0xff] %v997
        %1014 = vst [vmem:[#allocation3 + $0x60] sm:$0xff] %v998
        %1015 = vst [vmem:[#allocation3 + $0x68] sm:$0xff] %v999
        %1016 = vst [vmem:[#allocation3 + $0x70] sm:$0xff] %v1000
        %1017 = vst [vmem:[#allocation3 + $0x78] sm:$0xff] %v1001
      $region80: #{net_forward.1} parent=63 // pred_fallthru
        _
      // Predicated region
      $region81: #{net_forward.1} parent=63 // pred_check
        %p1018 = pneg %p517
      $region82: #{net_forward.1} parent=63 // pred_check_branch
        %1020 = sbr.rel (%p1018) target = $region84
      $region83: #{net_forward.1} parent=63 // pred_region
        %v1021 = vld [vmem:[#allocation3] sm:$0xff]
        %v1022 = vld [vmem:[#allocation3 + $0x8] sm:$0xff]
        %v1023 = vld [vmem:[#allocation3 + $0x10] sm:$0xff]
        %v1024 = vld [vmem:[#allocation3 + $0x18] sm:$0xff]
        %v1025 = vld [vmem:[#allocation3 + $0x20] sm:$0xff]
        %v1026 = vld [vmem:[#allocation3 + $0x28] sm:$0xff]
        %v1027 = vld [vmem:[#allocation3 + $0x30] sm:$0xff]
        %v1028 = vld [vmem:[#allocation3 + $0x38] sm:$0xff]
        %v1029 = vld [vmem:[#allocation3 + $0x40] sm:$0xff]
        %v1030 = vld [vmem:[#allocation3 + $0x48] sm:$0xff]
        %v1031 = vld [vmem:[#allocation3 + $0x50] sm:$0xff]
        %v1032 = vld [vmem:[#allocation3 + $0x58] sm:$0xff]
        %v1033 = vld [vmem:[#allocation3 + $0x60] sm:$0xff]
        %v1034 = vld [vmem:[#allocation3 + $0x68] sm:$0xff]
        %v1035 = vld [vmem:[#allocation3 + $0x70] sm:$0xff]
        %v1036 = vld [vmem:[#allocation3 + $0x78] sm:$0xff]
        %v1037 = vpack.c.bf16 %v1022, %v1021
        %v1038 = vpack.c.bf16 %v1024, %v1023
        %v1039 = vpack.c.bf16 %v1026, %v1025
        %v1040 = vpack.c.bf16 %v1028, %v1027
        %v1041 = vpack.c.bf16 %v1030, %v1029
        %v1042 = vpack.c.bf16 %v1032, %v1031
        %v1043 = vpack.c.bf16 %v1034, %v1033
        %v1044 = vpack.c.bf16 %v1036, %v1035
        %v1045 = vld [vmem:[%s499] sm:$0xf]
        %v1046 = vld [vmem:[%s499 + $0x4] sm:$0xf]
        %v1047 = vld [vmem:[%s499 + $0x8] sm:$0xf]
        %v1048 = vld [vmem:[%s499 + $0xc] sm:$0xf]
        %v1049 = vld [vmem:[%s499 + $0x10] sm:$0xf]
        %v1050 = vld [vmem:[%s499 + $0x14] sm:$0xf]
        %v1051 = vld [vmem:[%s499 + $0x18] sm:$0xf]
        %v1052 = vld [vmem:[%s499 + $0x1c] sm:$0xf]
        %v1053 = vld [vmem:[%s499 + $0x20] sm:$0xf]
        %v1054 = vld [vmem:[%s499 + $0x24] sm:$0xf]
        %v1055 = vld [vmem:[%s499 + $0x28] sm:$0xf]
        %v1056 = vld [vmem:[%s499 + $0x2c] sm:$0xf]
        %v1057 = vld [vmem:[%s499 + $0x30] sm:$0xf]
        %v1058 = vld [vmem:[%s499 + $0x34] sm:$0xf]
        %v1059 = vld [vmem:[%s499 + $0x38] sm:$0xf]
        %v1060 = vld [vmem:[%s499 + $0x3c] sm:$0xf]
        %v1061 = vld [vmem:[%s502] sm:$0x1]
        %v1063 = vperm.slane %v1061, 0
        %v1081 = vunpack.c.l.b16 %v1045
        %v1082 = vunpack.c.l.b16 %v1046
        %v1083 = vunpack.c.l.b16 %v1047
        %v1084 = vunpack.c.l.b16 %v1048
        %v1085 = vunpack.c.l.b16 %v1049
        %v1086 = vunpack.c.l.b16 %v1050
        %v1087 = vunpack.c.l.b16 %v1051
        %v1088 = vunpack.c.l.b16 %v1052
        %v1089 = vunpack.c.l.b16 %v1053
        %v1090 = vunpack.c.l.b16 %v1054
        %v1091 = vunpack.c.l.b16 %v1055
        %v1092 = vunpack.c.l.b16 %v1056
        %v1093 = vunpack.c.l.b16 %v1057
        %v1094 = vunpack.c.l.b16 %v1058
        %v1095 = vunpack.c.l.b16 %v1059
        %v1096 = vunpack.c.l.b16 %v1060
        %v1097 = vpack.c.b16 %v1082, %v1081
        %v1098 = vpack.c.b16 %v1084, %v1083
        %v1099 = vpack.c.b16 %v1086, %v1085
        %v1100 = vpack.c.b16 %v1088, %v1087
        %v1101 = vpack.c.b16 %v1090, %v1089
        %v1102 = vpack.c.b16 %v1092, %v1091
        %v1103 = vpack.c.b16 %v1094, %v1093
        %v1104 = vpack.c.b16 %v1096, %v1095
        %1113 = vmatpush.bf16.msra.mxu0 %v1104
        %1114 = vmatpush.bf16.msra.mxu0 %v1103
        %1115 = vmatpush.bf16.msra.mxu0 %v1102
        %1116 = vmatpush.bf16.msra.mxu0 %v1101
        %1117 = vmatpush.bf16.msra.mxu0 %v1100
        %1118 = vmatpush.bf16.msra.mxu0 %v1099
        %1119 = vmatpush.bf16.msra.mxu0 %v1098
        %1120 = vmatpush.bf16.msra.mxu0 %v1097
        %1121 = vmatmul.bf16.gmra.mxu0 %v1037
        %v1122 = vpop.f32.mrf.mxu0
        %v1123 = vadd.f32 %v1063, %v1122
        %v1124 = vpop.f32.mrf.mxu0
        %v1125 = vadd.f32 %v1063, %v1124
        %1126 = vmatmul.bf16.gmra.mxu0 %v1038
        %v1127 = vpop.f32.mrf.mxu0
        %v1128 = vadd.f32 %v1063, %v1127
        %v1129 = vpop.f32.mrf.mxu0
        %v1130 = vadd.f32 %v1063, %v1129
        %1131 = vmatmul.bf16.gmra.mxu0 %v1039
        %v1132 = vpop.f32.mrf.mxu0
        %v1133 = vadd.f32 %v1063, %v1132
        %v1134 = vpop.f32.mrf.mxu0
        %v1135 = vadd.f32 %v1063, %v1134
        %1136 = vmatmul.bf16.gmra.mxu0 %v1040
        %v1137 = vpop.f32.mrf.mxu0
        %v1138 = vadd.f32 %v1063, %v1137
        %v1139 = vpop.f32.mrf.mxu0
        %v1140 = vadd.f32 %v1063, %v1139
        %1141 = vmatmul.bf16.gmra.mxu0 %v1041
        %v1142 = vpop.f32.mrf.mxu0
        %v1143 = vadd.f32 %v1063, %v1142
        %v1144 = vpop.f32.mrf.mxu0
        %v1145 = vadd.f32 %v1063, %v1144
        %1146 = vmatmul.bf16.gmra.mxu0 %v1042
        %v1147 = vpop.f32.mrf.mxu0
        %v1148 = vadd.f32 %v1063, %v1147
        %v1149 = vpop.f32.mrf.mxu0
        %v1150 = vadd.f32 %v1063, %v1149
        %1151 = vmatmul.bf16.gmra.mxu0 %v1043
        %v1152 = vpop.f32.mrf.mxu0
        %v1153 = vadd.f32 %v1063, %v1152
        %v1154 = vpop.f32.mrf.mxu0
        %v1155 = vadd.f32 %v1063, %v1154
        %1156 = vmatmul.bf16.gmra.mxu0 %v1044
        %v1157 = vpop.f32.mrf.mxu0
        %v1158 = vadd.f32 %v1063, %v1157
        %v1159 = vpop.f32.mrf.mxu0
        %v1160 = vadd.f32 %v1063, %v1159
        %1161 = vdwg.mxu0
        %v1162 = vmax.f32 %v1123, 0.0
        %v1163 = vmax.f32 %v1125, 0.0
        %v1164 = vmax.f32 %v1128, 0.0
        %v1165 = vmax.f32 %v1130, 0.0
        %v1166 = vmax.f32 %v1133, 0.0
        %v1167 = vmax.f32 %v1135, 0.0
        %v1168 = vmax.f32 %v1138, 0.0
        %v1169 = vmax.f32 %v1140, 0.0
        %v1170 = vmax.f32 %v1143, 0.0
        %v1171 = vmax.f32 %v1145, 0.0
        %v1172 = vmax.f32 %v1148, 0.0
        %v1173 = vmax.f32 %v1150, 0.0
        %v1174 = vmax.f32 %v1153, 0.0
        %v1175 = vmax.f32 %v1155, 0.0
        %v1176 = vmax.f32 %v1158, 0.0
        %v1177 = vmax.f32 %v1160, 0.0
        %v1178 = vpack.c.bf16 %v1163, %v1162
        %v1179 = vpack.c.bf16 %v1165, %v1164
        %v1180 = vpack.c.bf16 %v1167, %v1166
        %v1181 = vpack.c.bf16 %v1169, %v1168
        %v1182 = vpack.c.bf16 %v1171, %v1170
        %v1183 = vpack.c.bf16 %v1173, %v1172
        %v1184 = vpack.c.bf16 %v1175, %v1174
        %v1185 = vpack.c.bf16 %v1177, %v1176
        %v1186 = vld [vmem:[%s507] sm:$0xf]
        %v1187 = vld [vmem:[%s507 + $0x4] sm:$0xf]
        %v1188 = vld [vmem:[%s507 + $0x8] sm:$0xf]
        %v1189 = vld [vmem:[%s507 + $0xc] sm:$0xf]
        %v1190 = vld [vmem:[%s507 + $0x10] sm:$0xf]
        %v1191 = vld [vmem:[%s507 + $0x14] sm:$0xf]
        %v1192 = vld [vmem:[%s507 + $0x18] sm:$0xf]
        %v1193 = vld [vmem:[%s507 + $0x1c] sm:$0xf]
        %v1194 = vld [vmem:[%s507 + $0x20] sm:$0xf]
        %v1195 = vld [vmem:[%s507 + $0x24] sm:$0xf]
        %v1196 = vld [vmem:[%s507 + $0x28] sm:$0xf]
        %v1197 = vld [vmem:[%s507 + $0x2c] sm:$0xf]
        %v1198 = vld [vmem:[%s507 + $0x30] sm:$0xf]
        %v1199 = vld [vmem:[%s507 + $0x34] sm:$0xf]
        %v1200 = vld [vmem:[%s507 + $0x38] sm:$0xf]
        %v1201 = vld [vmem:[%s507 + $0x3c] sm:$0xf]
        %v1202 = vld [vmem:[%s510] sm:$0x1]
        %v1204 = vperm.slane %v1202, 0
        %v1222 = vunpack.c.l.b16 %v1186
        %v1223 = vunpack.c.l.b16 %v1187
        %v1224 = vunpack.c.l.b16 %v1188
        %v1225 = vunpack.c.l.b16 %v1189
        %v1226 = vunpack.c.l.b16 %v1190
        %v1227 = vunpack.c.l.b16 %v1191
        %v1228 = vunpack.c.l.b16 %v1192
        %v1229 = vunpack.c.l.b16 %v1193
        %v1230 = vunpack.c.l.b16 %v1194
        %v1231 = vunpack.c.l.b16 %v1195
        %v1232 = vunpack.c.l.b16 %v1196
        %v1233 = vunpack.c.l.b16 %v1197
        %v1234 = vunpack.c.l.b16 %v1198
        %v1235 = vunpack.c.l.b16 %v1199
        %v1236 = vunpack.c.l.b16 %v1200
        %v1237 = vunpack.c.l.b16 %v1201
        %v1238 = vpack.c.b16 %v1223, %v1222
        %v1239 = vpack.c.b16 %v1225, %v1224
        %v1240 = vpack.c.b16 %v1227, %v1226
        %v1241 = vpack.c.b16 %v1229, %v1228
        %v1242 = vpack.c.b16 %v1231, %v1230
        %v1243 = vpack.c.b16 %v1233, %v1232
        %v1244 = vpack.c.b16 %v1235, %v1234
        %v1245 = vpack.c.b16 %v1237, %v1236
        %1254 = vmatpush.bf16.msra.mxu0 %v1245
        %1255 = vmatpush.bf16.msra.mxu0 %v1244
        %1256 = vmatpush.bf16.msra.mxu0 %v1243
        %1257 = vmatpush.bf16.msra.mxu0 %v1242
        %1258 = vmatpush.bf16.msra.mxu0 %v1241
        %1259 = vmatpush.bf16.msra.mxu0 %v1240
        %1260 = vmatpush.bf16.msra.mxu0 %v1239
        %1261 = vmatpush.bf16.msra.mxu0 %v1238
        %1262 = vmatmul.bf16.gmra.mxu0 %v1178
        %v1263 = vpop.f32.mrf.mxu0
        %v1264 = vadd.f32 %v1204, %v1263
        %v1265 = vpop.f32.mrf.mxu0
        %v1266 = vadd.f32 %v1204, %v1265
        %1267 = vmatmul.bf16.gmra.mxu0 %v1179
        %v1268 = vpop.f32.mrf.mxu0
        %v1269 = vadd.f32 %v1204, %v1268
        %v1270 = vpop.f32.mrf.mxu0
        %v1271 = vadd.f32 %v1204, %v1270
        %1272 = vmatmul.bf16.gmra.mxu0 %v1180
        %v1273 = vpop.f32.mrf.mxu0
        %v1274 = vadd.f32 %v1204, %v1273
        %v1275 = vpop.f32.mrf.mxu0
        %v1276 = vadd.f32 %v1204, %v1275
        %1277 = vmatmul.bf16.gmra.mxu0 %v1181
        %v1278 = vpop.f32.mrf.mxu0
        %v1279 = vadd.f32 %v1204, %v1278
        %v1280 = vpop.f32.mrf.mxu0
        %v1281 = vadd.f32 %v1204, %v1280
        %1282 = vmatmul.bf16.gmra.mxu0 %v1182
        %v1283 = vpop.f32.mrf.mxu0
        %v1284 = vadd.f32 %v1204, %v1283
        %v1285 = vpop.f32.mrf.mxu0
        %v1286 = vadd.f32 %v1204, %v1285
        %1287 = vmatmul.bf16.gmra.mxu0 %v1183
        %v1288 = vpop.f32.mrf.mxu0
        %v1289 = vadd.f32 %v1204, %v1288
        %v1290 = vpop.f32.mrf.mxu0
        %v1291 = vadd.f32 %v1204, %v1290
        %1292 = vmatmul.bf16.gmra.mxu0 %v1184
        %v1293 = vpop.f32.mrf.mxu0
        %v1294 = vadd.f32 %v1204, %v1293
        %v1295 = vpop.f32.mrf.mxu0
        %v1296 = vadd.f32 %v1204, %v1295
        %1297 = vmatmul.bf16.gmra.mxu0 %v1185
        %v1298 = vpop.f32.mrf.mxu0
        %v1299 = vadd.f32 %v1204, %v1298
        %v1300 = vpop.f32.mrf.mxu0
        %v1301 = vadd.f32 %v1204, %v1300
        %1302 = vdwg.mxu0
        %v1303 = vmax.f32 %v1264, 0.0
        %v1304 = vmax.f32 %v1266, 0.0
        %v1305 = vmax.f32 %v1269, 0.0
        %v1306 = vmax.f32 %v1271, 0.0
        %v1307 = vmax.f32 %v1274, 0.0
        %v1308 = vmax.f32 %v1276, 0.0
        %v1309 = vmax.f32 %v1279, 0.0
        %v1310 = vmax.f32 %v1281, 0.0
        %v1311 = vmax.f32 %v1284, 0.0
        %v1312 = vmax.f32 %v1286, 0.0
        %v1313 = vmax.f32 %v1289, 0.0
        %v1314 = vmax.f32 %v1291, 0.0
        %v1315 = vmax.f32 %v1294, 0.0
        %v1316 = vmax.f32 %v1296, 0.0
        %v1317 = vmax.f32 %v1299, 0.0
        %v1318 = vmax.f32 %v1301, 0.0
        %v1319 = vpack.c.bf16 %v1303, %v1303
        %v1320 = vpack.c.bf16 %v1304, %v1304
        %v1321 = vpack.c.bf16 %v1305, %v1305
        %v1322 = vpack.c.bf16 %v1306, %v1306
        %v1323 = vpack.c.bf16 %v1307, %v1307
        %v1324 = vpack.c.bf16 %v1308, %v1308
        %v1325 = vpack.c.bf16 %v1309, %v1309
        %v1326 = vpack.c.bf16 %v1310, %v1310
        %v1327 = vpack.c.bf16 %v1311, %v1311
        %v1328 = vpack.c.bf16 %v1312, %v1312
        %v1329 = vpack.c.bf16 %v1313, %v1313
        %v1330 = vpack.c.bf16 %v1314, %v1314
        %v1331 = vpack.c.bf16 %v1315, %v1315
        %v1332 = vpack.c.bf16 %v1316, %v1316
        %v1333 = vpack.c.bf16 %v1317, %v1317
        %v1334 = vpack.c.bf16 %v1318, %v1318
        %p1335 = scmp.lt.s32.totalorder %s27, 0
        %s1336 = ssub.s32 0, %s27
        %s1337 = scalar_select %p1335, %s1336, %s27
        %s1338 = sand.u32 %s1337, 1
        %s1339 = ssub.s32 0, %s1338
        %s1340 = scalar_select %p1335, %s1339, %s1338
        %p1341 = scmp.ne.s32.totalorder %s1340, 0
        %p1342 = scmp.lt.s32.totalorder %s1340, 0
        %p1343 = pnand %p1342, %p1341
        %p1344 = pneg %p1343
        %s1345 = sadd.s32 %s1340, 2
        %s1346 = scalar_select %p1344, %s1345, %s1340
        %s1347 = sshra.s32 %s511, 3
        %s1348 = sand.u32 %s511, 7
        %s1349 = smul.u32 %s1346, 16
        %s1350 = sadd.s32 %s1347, %s1349
        %s1351 = smul.addr %s1350, 4
        %s1352 = scalar_lea.vmem [#allocation2], %s1351
        %1353 = vst [vmem:[%s1352] sm:$0xf] %v1319
        %1354 = vst [vmem:[%s1352 + $0x4] sm:$0xf] %v1320
        %1355 = vst [vmem:[%s1352 + $0x8] sm:$0xf] %v1321
        %1356 = vst [vmem:[%s1352 + $0xc] sm:$0xf] %v1322
        %1357 = vst [vmem:[%s1352 + $0x10] sm:$0xf] %v1323
        %1358 = vst [vmem:[%s1352 + $0x14] sm:$0xf] %v1324
        %1359 = vst [vmem:[%s1352 + $0x18] sm:$0xf] %v1325
        %1360 = vst [vmem:[%s1352 + $0x1c] sm:$0xf] %v1326
        %1361 = vst [vmem:[%s1352 + $0x20] sm:$0xf] %v1327
        %1362 = vst [vmem:[%s1352 + $0x24] sm:$0xf] %v1328
        %1363 = vst [vmem:[%s1352 + $0x28] sm:$0xf] %v1329
        %1364 = vst [vmem:[%s1352 + $0x2c] sm:$0xf] %v1330
        %1365 = vst [vmem:[%s1352 + $0x30] sm:$0xf] %v1331
        %1366 = vst [vmem:[%s1352 + $0x34] sm:$0xf] %v1332
        %1367 = vst [vmem:[%s1352 + $0x38] sm:$0xf] %v1333
        %1368 = vst [vmem:[%s1352 + $0x3c] sm:$0xf] %v1334
      $region84: #{net_forward.1} parent=63 // pred_fallthru
        _
      %p1369 = scmp.eq.s32.totalorder %s27, 1
      %p1370 = pnand %p1369, %p517
      %p1371 = pneg %p1370
      // Predicated region
      $region85: #{net_forward.1} parent=63 // pred_check
        _
      $region86: #{net_forward.1} parent=63 // pred_check_branch
        %1373 = sbr.rel (%p1370) target = $region88
      $region87: #{net_forward.1} parent=63 // pred_region
        %p1374 = scmp.lt.s32.totalorder %s27, 0
        %s1375 = ssub.s32 0, %s27
        %s1376 = scalar_select %p1374, %s1375, %s27
        %s1377 = sand.u32 %s1376, 1
        %s1378 = ssub.s32 0, %s1377
        %s1379 = scalar_select %p1374, %s1378, %s1377
        %p1380 = scmp.ne.s32.totalorder %s1379, 0
        %p1381 = scmp.lt.s32.totalorder %s1379, 0
        %p1382 = pnand %p1381, %p1380
        %p1383 = pneg %p1382
        %s1384 = sadd.s32 %s1379, 2
        %s1385 = scalar_select %p1383, %s1384, %s1379
        %s1386 = sshra.s32 %s511, 3
        %s1387 = sand.u32 %s511, 7
        %s1388 = smul.u32 %s1385, 16
        %s1389 = sadd.s32 %s1386, %s1388
        %s1390 = smul.addr %s1389, 4
        %s1391 = scalar_lea.vmem [#allocation2], %s1390
        %v1392 = vld [vmem:[%s1391] sm:$0xf]
        %v1393 = vld [vmem:[%s1391 + $0x4] sm:$0xf]
        %v1394 = vld [vmem:[%s1391 + $0x8] sm:$0xf]
        %v1395 = vld [vmem:[%s1391 + $0xc] sm:$0xf]
        %v1396 = vld [vmem:[%s1391 + $0x10] sm:$0xf]
        %v1397 = vld [vmem:[%s1391 + $0x14] sm:$0xf]
        %v1398 = vld [vmem:[%s1391 + $0x18] sm:$0xf]
        %v1399 = vld [vmem:[%s1391 + $0x1c] sm:$0xf]
        %v1400 = vld [vmem:[%s1391 + $0x20] sm:$0xf]
        %v1401 = vld [vmem:[%s1391 + $0x24] sm:$0xf]
        %v1402 = vld [vmem:[%s1391 + $0x28] sm:$0xf]
        %v1403 = vld [vmem:[%s1391 + $0x2c] sm:$0xf]
        %v1404 = vld [vmem:[%s1391 + $0x30] sm:$0xf]
        %v1405 = vld [vmem:[%s1391 + $0x34] sm:$0xf]
        %v1406 = vld [vmem:[%s1391 + $0x38] sm:$0xf]
        %v1407 = vld [vmem:[%s1391 + $0x3c] sm:$0xf]
        %v1408 = vld [vmem:[#allocation4] sm:$0xff]
        %v1409 = vld [vmem:[%s494] sm:$0xf]
        %v1426 = vunpack.c.l.b16 %v1392
        %v1427 = vunpack.c.l.b16 %v1393
        %v1428 = vunpack.c.l.b16 %v1394
        %v1429 = vunpack.c.l.b16 %v1395
        %v1430 = vunpack.c.l.b16 %v1396
        %v1431 = vunpack.c.l.b16 %v1397
        %v1432 = vunpack.c.l.b16 %v1398
        %v1433 = vunpack.c.l.b16 %v1399
        %v1434 = vunpack.c.l.b16 %v1400
        %v1435 = vunpack.c.l.b16 %v1401
        %v1436 = vunpack.c.l.b16 %v1402
        %v1437 = vunpack.c.l.b16 %v1403
        %v1438 = vunpack.c.l.b16 %v1404
        %v1439 = vunpack.c.l.b16 %v1405
        %v1440 = vunpack.c.l.b16 %v1406
        %v1441 = vunpack.c.l.b16 %v1407
        %v1442 = vpack.c.b16 %v1427, %v1426
        %v1443 = vpack.c.b16 %v1429, %v1428
        %v1444 = vpack.c.b16 %v1431, %v1430
        %v1445 = vpack.c.b16 %v1433, %v1432
        %v1446 = vpack.c.b16 %v1435, %v1434
        %v1447 = vpack.c.b16 %v1437, %v1436
        %v1448 = vpack.c.b16 %v1439, %v1438
        %v1449 = vpack.c.b16 %v1441, %v1440
        %1458 = vmatpush.bf16.msra.mxu0 %v1449
        %1459 = vmatpush.bf16.msra.mxu0 %v1448
        %1460 = vmatpush.bf16.msra.mxu0 %v1447
        %1461 = vmatpush.bf16.msra.mxu0 %v1446
        %1462 = vmatpush.bf16.msra.mxu0 %v1445
        %1463 = vmatpush.bf16.msra.mxu0 %v1444
        %1464 = vmatpush.bf16.msra.mxu0 %v1443
        %1465 = vmatpush.bf16.msra.mxu0 %v1442
        %1466 = vmatmul.bf16.gmra.mxu0 %v1409
        %v1467 = vpop.f32.mrf.mxu0
        %v1468 = vadd.f32 0.0, %v1467
        %v1469 = vpop.f32.mrf.mxu0
        %1470 = vdwg.mxu0
        %v1471 = vadd.f32 %v1408, %v1468
        %1472 = vst [vmem:[#allocation4] sm:$0xff] %v1471
      $region88: #{net_forward.1} parent=63 // pred_fallthru
        _
      %p1473 = pnand %p1369, %p514
      %p1474 = pneg %p1473
      %p1475 = pnand %p1474, %p517
      %p1476 = pneg %p1475
      // Predicated region
      $region89: #{net_forward.1} parent=63 // pred_check
        _
      $region90: #{net_forward.1} parent=63 // pred_check_branch
        %1478 = sbr.rel (%p1475) target = $region92
      $region91: #{net_forward.1} parent=63 // pred_region
        %v1479 = vld [vmem:[#allocation4] sm:$0xff]
        %v1480 = vpack.c.bf16 %v1479, %v1479
        %v1481 = vld [vmem:[%s7] sm:$0xf]
        %v1482 = vld [vmem:[%s7 + $0x4] sm:$0xf]
        %v1483 = vld [vmem:[%s7 + $0x8] sm:$0xf]
        %v1484 = vld [vmem:[%s7 + $0xc] sm:$0xf]
        %v1485 = vld [vmem:[%s7 + $0x10] sm:$0xf]
        %v1486 = vld [vmem:[%s7 + $0x14] sm:$0xf]
        %v1487 = vld [vmem:[%s7 + $0x18] sm:$0xf]
        %v1488 = vld [vmem:[%s7 + $0x1c] sm:$0xf]
        %v1489 = vld [vmem:[%s7 + $0x20] sm:$0xf]
        %v1490 = vld [vmem:[%s7 + $0x24] sm:$0xf]
        %v1491 = vld [vmem:[%s7 + $0x28] sm:$0xf]
        %v1492 = vld [vmem:[%s7 + $0x2c] sm:$0xf]
        %v1493 = vld [vmem:[%s7 + $0x30] sm:$0xf]
        %v1494 = vld [vmem:[%s7 + $0x34] sm:$0xf]
        %v1495 = vld [vmem:[%s7 + $0x38] sm:$0xf]
        %v1496 = vld [vmem:[%s7 + $0x3c] sm:$0xf]
        %v1497 = vld [vmem:[%s8] sm:$0x1]
        %v1499 = vperm.slane %v1497, 0
        %v1517 = vunpack.c.l.b16 %v1481
        %v1518 = vunpack.c.l.b16 %v1482
        %v1519 = vunpack.c.l.b16 %v1483
        %v1520 = vunpack.c.l.b16 %v1484
        %v1521 = vunpack.c.l.b16 %v1485
        %v1522 = vunpack.c.l.b16 %v1486
        %v1523 = vunpack.c.l.b16 %v1487
        %v1524 = vunpack.c.l.b16 %v1488
        %v1525 = vunpack.c.l.b16 %v1489
        %v1526 = vunpack.c.l.b16 %v1490
        %v1527 = vunpack.c.l.b16 %v1491
        %v1528 = vunpack.c.l.b16 %v1492
        %v1529 = vunpack.c.l.b16 %v1493
        %v1530 = vunpack.c.l.b16 %v1494
        %v1531 = vunpack.c.l.b16 %v1495
        %v1532 = vunpack.c.l.b16 %v1496
        %v1533 = vpack.c.b16 %v1518, %v1517
        %v1534 = vpack.c.b16 %v1520, %v1519
        %v1535 = vpack.c.b16 %v1522, %v1521
        %v1536 = vpack.c.b16 %v1524, %v1523
        %v1537 = vpack.c.b16 %v1526, %v1525
        %v1538 = vpack.c.b16 %v1528, %v1527
        %v1539 = vpack.c.b16 %v1530, %v1529
        %v1540 = vpack.c.b16 %v1532, %v1531
        %1549 = vmatpush.bf16.msra.mxu0 %v1540
        %1550 = vmatpush.bf16.msra.mxu0 %v1539
        %1551 = vmatpush.bf16.msra.mxu0 %v1538
        %1552 = vmatpush.bf16.msra.mxu0 %v1537
        %1553 = vmatpush.bf16.msra.mxu0 %v1536
        %1554 = vmatpush.bf16.msra.mxu0 %v1535
        %1555 = vmatpush.bf16.msra.mxu0 %v1534
        %1556 = vmatpush.bf16.msra.mxu0 %v1533
        %1557 = vmatmul.bf16.gmra.mxu0 %v1480
        %v1558 = vpop.f32.mrf.mxu0
        %v1559 = vadd.f32 %v1499, %v1558
        %v1560 = vpop.f32.mrf.mxu0
        %1561 = vdwg.mxu0
        %v1562 = vmax.f32 %v1559, 0.0
        %v1563 = vpack.c.bf16 %v1562, %v1562
        %v1564 = vld [vmem:[%s9] sm:$0xf]
        %v1565 = vld [vmem:[%s9 + $0x4] sm:$0xf]
        %v1566 = vld [vmem:[%s9 + $0x8] sm:$0xf]
        %v1567 = vld [vmem:[%s9 + $0xc] sm:$0xf]
        %v1568 = vld [vmem:[%s9 + $0x10] sm:$0xf]
        %v1569 = vld [vmem:[%s9 + $0x14] sm:$0xf]
        %v1570 = vld [vmem:[%s9 + $0x18] sm:$0xf]
        %v1571 = vld [vmem:[%s9 + $0x1c] sm:$0xf]
        %v1572 = vld [vmem:[%s9 + $0x20] sm:$0xf]
        %v1573 = vld [vmem:[%s9 + $0x24] sm:$0xf]
        %v1574 = vld [vmem:[%s9 + $0x28] sm:$0xf]
        %v1575 = vld [vmem:[%s9 + $0x2c] sm:$0xf]
        %v1576 = vld [vmem:[%s9 + $0x30] sm:$0xf]
        %v1577 = vld [vmem:[%s9 + $0x34] sm:$0xf]
        %v1578 = vld [vmem:[%s9 + $0x38] sm:$0xf]
        %v1579 = vld [vmem:[%s9 + $0x3c] sm:$0xf]
        %v1580 = vld [vmem:[%s10] sm:$0x1]
        %v1582 = vperm.slane %v1580, 0
        %v1600 = vunpack.c.l.b16 %v1564
        %v1601 = vunpack.c.l.b16 %v1565
        %v1602 = vunpack.c.l.b16 %v1566
        %v1603 = vunpack.c.l.b16 %v1567
        %v1604 = vunpack.c.l.b16 %v1568
        %v1605 = vunpack.c.l.b16 %v1569
        %v1606 = vunpack.c.l.b16 %v1570
        %v1607 = vunpack.c.l.b16 %v1571
        %v1608 = vunpack.c.l.b16 %v1572
        %v1609 = vunpack.c.l.b16 %v1573
        %v1610 = vunpack.c.l.b16 %v1574
        %v1611 = vunpack.c.l.b16 %v1575
        %v1612 = vunpack.c.l.b16 %v1576
        %v1613 = vunpack.c.l.b16 %v1577
        %v1614 = vunpack.c.l.b16 %v1578
        %v1615 = vunpack.c.l.b16 %v1579
        %v1616 = vpack.c.b16 %v1601, %v1600
        %v1617 = vpack.c.b16 %v1603, %v1602
        %v1618 = vpack.c.b16 %v1605, %v1604
        %v1619 = vpack.c.b16 %v1607, %v1606
        %v1620 = vpack.c.b16 %v1609, %v1608
        %v1621 = vpack.c.b16 %v1611, %v1610
        %v1622 = vpack.c.b16 %v1613, %v1612
        %v1623 = vpack.c.b16 %v1615, %v1614
        %1632 = vmatpush.bf16.msra.mxu0 %v1623
        %1633 = vmatpush.bf16.msra.mxu0 %v1622
        %1634 = vmatpush.bf16.msra.mxu0 %v1621
        %1635 = vmatpush.bf16.msra.mxu0 %v1620
        %1636 = vmatpush.bf16.msra.mxu0 %v1619
        %1637 = vmatpush.bf16.msra.mxu0 %v1618
        %1638 = vmatpush.bf16.msra.mxu0 %v1617
        %1639 = vmatpush.bf16.msra.mxu0 %v1616
        %1640 = vmatmul.bf16.gmra.mxu0 %v1563
        %v1641 = vpop.f32.mrf.mxu0
        %v1642 = vadd.f32 %v1582, %v1641
        %v1643 = vpop.f32.mrf.mxu0
        %1644 = vdwg.mxu0
        %1645 = vst [vmem:[%s11] sm:$0xff] %v1642
      $region92: #{net_forward.1} parent=63 // pred_fallthru
        _
      // Predicated region
      $region93: #{net_forward.1} parent=63 // pred_check
        %p1646 = pneg %p322
      $region94: #{net_forward.1} parent=63 // pred_check_branch
        %1648 = sbr.rel (%p1646) target = $region96
      $region95: #{net_forward.1} parent=63 // pred_region
        _
      $region96: #{net_forward.1} parent=63 // pred_fallthru
        _
      // Predicated region
      $region97: #{net_forward.1} parent=63 // pred_check
        %p1649 = pneg %p322
      $region98: #{net_forward.1} parent=63 // pred_check_branch
        %1651 = sbr.rel (%p1649) target = $region100
      $region99: #{net_forward.1} parent=63 // pred_region
        _
      $region100: #{net_forward.1} parent=63 // pred_fallthru
        _
    $region64: #{net_forward.1} parent=5 // pred_fallthru
      _
    %p1652 = scmp.le.s32.totalorder 2, %s17
    // Predicated region
    $region101: #{net_forward.1} parent=5 // pred_check
      %p1653 = pneg %p1652
    $region102: #{net_forward.1} parent=5 // pred_check_branch
      %1655 = sbr.rel (%p1653) target = $region104
    $region103: #{net_forward.1} parent=5 // pred_region
      %s1656 = ssub.s32 %s17, 2
    $region104: #{net_forward.1} parent=5 // pred_fallthru
      _
  $region6: #{net_forward.1} parent=0 // loop_footer
    %s21 = sadd.s32 1, %s17
  $region7: #{net_forward.1} parent=0 // loop_footer_branch
    %16 = sbr.rel target = $region3
  $region8: #{net_forward.1} parent=0 // loop_exit
    _

</llo_original>
